<compile_context>
chip_gen: v6e
topology: v6e:2x2x1
jax: 0.10.0
libtpu: 0.0.40
codegen_flags: <defaults>
</compile_context>

<pallas_src>
import functools
import math

import jax
import jax.numpy as jnp
import numpy as np
from jax import lax
from jax.experimental import pallas as pl
from jax.experimental.pallas import tpu as pltpu


# ---------------------------------------------------------------------------
# Pass 1: per batch, accumulate over N tiles
#   kv[c, d]    = sum_n k2n[n, c] * v[n, d]
#   colsq[0, c] = sum_n k2n[n, c]^2
# The deferred F.normalize(dim=-2) column scale and 1/sqrt(N) are applied in
# pass 2 on the q side (lane-broadcast there, no relayout).
# ---------------------------------------------------------------------------
def _kv_pass_kernel(x_ref, wkv_ref, bkv_ref, kv_ref, colsq_ref, *,
                    dim, chunk, tile_n, n_valid, mask_rows):
    n_idx = pl.program_id(1)

    @pl.when(n_idx == 0)
    def _init():
        kv_ref[...] = jnp.zeros_like(kv_ref)
        colsq_ref[...] = jnp.zeros_like(colsq_ref)

    def body(ci, carry):
        off = pl.multiple_of(ci * chunk, chunk)
        # Cast the x tile to bf16 in-kernel (no standalone HBM cast pass).
        xc = x_ref[pl.ds(off, chunk), :].astype(jnp.bfloat16)
        # Fused [k | v] projection; k's channel-mean centering is folded into
        # the weights, so no cross-lane mean/subtract here.
        kv_proj = (jnp.dot(xc, wkv_ref[...],
                           preferred_element_type=jnp.float32) + bkv_ref[...])
        k = kv_proj[:, :dim]
        v = kv_proj[:, dim:]
        k2 = k * k
        k2s = jnp.sum(k2, axis=1, keepdims=True)
        k2n = k2 * pl.reciprocal(k2s + 1e-7, approx=True)   # k2 / (k2s + 1e-7)
        if mask_rows:
            row = (n_idx * tile_n + off
                   + lax.broadcasted_iota(jnp.int32, (chunk, 1), 0))
            k2n = jnp.where(row < n_valid, k2n, 0.0)
        # kv[c, d] += k2n^T @ v   (bf16 MXU operands, f32 accumulation).
        # The transposed-LHS contraction here is inherent to the reduction;
        # pass 2's matmul stays canonical because kv is stored (c, d)-oriented.
        kv_ref[...] += lax.dot_general(
            k2n.astype(jnp.bfloat16), v.astype(jnp.bfloat16),
            (((0,), (0,)), ((), ())), preferred_element_type=jnp.float32)
        colsq_ref[...] += jnp.sum(k2n * k2n, axis=0, keepdims=True)
        return carry

    lax.fori_loop(0, tile_n // chunk, body, 0, unroll=True)


# ---------------------------------------------------------------------------
# Pass 2: per tile, q/v projection, q normalization (column scale of k2n and
# 1/sqrt(N) folded into q2n), t2 = q2n @ kv, attn = v + t2, final projection.
# ---------------------------------------------------------------------------
def _out_pass_kernel(x_ref, kv_ref, colsq_ref, wvq_ref, bvq_ref, wln_ref,
                     bln_ref, out_ref, *, dim, chunk, tile_n, inv_sqrt_n):
    # Deferred F.normalize(k2n, dim=-2): 1 / max(||col_c||, 1e-12), with the
    # 1/sqrt(N) scale folded in.  (1, C) lane-broadcast -> free on the q side.
    inv_col = lax.rsqrt(jnp.maximum(colsq_ref[...], 1e-24)) * inv_sqrt_n
    kv = kv_ref[...].astype(jnp.bfloat16)                      # (C, C)

    def body(ci, carry):
        off = pl.multiple_of(ci * chunk, chunk)
        xc = x_ref[pl.ds(off, chunk), :].astype(jnp.bfloat16)
        vq_proj = (jnp.dot(xc, wvq_ref[...],
                           preferred_element_type=jnp.float32) + bvq_ref[...])
        v = vq_proj[:, :dim]
        q = vq_proj[:, dim:]
        q2 = q * q
        q2s = jnp.sum(q2, axis=1, keepdims=True)
        q2n = q2 * pl.reciprocal(q2s + 1e-7, approx=True)      # q2/(q2s+1e-7)
        rowsq = jnp.sum(q2n * q2n, axis=1, keepdims=True)
        q2n = q2n * lax.rsqrt(jnp.maximum(rowsq, 1e-24)) * inv_col
        # Canonical (chunk, C) @ (C, C) matmul (kv already (c, d)-oriented).
        t2 = jnp.dot(q2n.astype(jnp.bfloat16), kv,
                     preferred_element_type=jnp.float32)
        attn = v + t2
        out_ref[pl.ds(off, chunk), :] = (
            jnp.dot(attn.astype(jnp.bfloat16), wln_ref[...],
                    preferred_element_type=jnp.float32) + bln_ref[...]
        ).astype(out_ref.dtype)
        return carry

    lax.fori_loop(0, tile_n // chunk, body, 0, unroll=True)


# ---------------------------------------------------------------------------
# Wrapper helpers.
# ---------------------------------------------------------------------------
def _vmem_limit_bytes():
    cap = 128 * 1024 * 1024
    try:
        info = pltpu.get_tpu_info()
        cap = int(getattr(info, "vmem_capacity_bytes", cap) or cap)
    except Exception:
        pass
    # ~16 MiB headroom for Mosaic-internal scratch; never ask for more than
    # 112 MiB.  v5e/v6e (128 MiB) -> 112 MiB; v7x (64 MiB / TC) -> 48 MiB.
    return int(min(max(cap - 16 * 1024 * 1024, 32 * 1024 * 1024),
                   112 * 1024 * 1024))


def _pick_tile_n(N, C, out_itemsize, vmem_limit):
    """Largest N-tile whose per-pass VMEM footprint fits in ~half the limit."""
    resident = (2 * 2 * (C * 2 * C * 2)        # [Wk|Wv], [Wv|Wq] bf16
                + 2 * C * C * 2                # Wln bf16
                + 3 * C * C * 4                # kv f32 (out / in)
                + 16 * C * 4)                  # biases + colsq

    def footprint(t):
        return (2 * t * C * 4                  # double-buffered f32 x tile
                + 2 * t * C * out_itemsize     # double-buffered out tile
                + resident)

    budget = vmem_limit // 2
    cands = [t for t in (2048, 1024, 512, 256, 128, 64, 32, 16)
             if footprint(t) <= budget] or [16]
    exact = next((t for t in cands if N % t == 0), None)
    if exact is not None and exact >= min(256, cands[0]):
        return exact, N
    # No suitably large exact divisor: pad N up (masked in pass 1).
    if N <= cands[0]:
        t = max(16, -(-N // 16) * 16)          # single sublane-aligned tile
    else:
        t = next((c for c in cands
                  if c >= 256 and (-(-N // c) * c - N) * 16 <= N),
                 min(cands[0], 256))
    n_pad = -(-N // t) * t
    return t, n_pad


def _pick_chunk(tile_n):
    for c in (256, 128):
        if tile_n > c and tile_n % c == 0:
            return c
    return tile_n


def essattn_pallas(x, w_qkv, b_qkv, w_ln, b_ln, *, tile_n=None, out_dtype=None):
    """ESSAttn forward.  Parameters in torch nn.Linear layout:
       w_qkv: (3C, C), b_qkv: (3C,), w_ln: (C, C), b_ln: (C,)."""
    B, N, C = x.shape
    out_dtype = x.dtype if out_dtype is None else out_dtype

    # torch Linear computes x @ W.T -> pre-transpose to (in, out).
    wq = jnp.transpose(w_qkv[0 * C:1 * C, :])
    wk = jnp.transpose(w_qkv[1 * C:2 * C, :])
    wv = jnp.transpose(w_qkv[2 * C:3 * C, :])
    bq, bk, bv = b_qkv[:C], b_qkv[C:2 * C], b_qkv[2 * C:]

    # Fold the per-token channel-mean centering of q / k into the weights
    # (exact):  (x @ W + b) - mean_c(.) == x @ (W - mean_out(W)) + (b - mean(b))
    wq = wq - jnp.mean(wq, axis=1, keepdims=True)
    bq = bq - jnp.mean(bq)
    wk = wk - jnp.mean(wk, axis=1, keepdims=True)
    bk = bk - jnp.mean(bk)

    w_kv = jnp.concatenate([wk, wv], axis=1).astype(jnp.bfloat16)    # (C, 2C)
    w_vq = jnp.concatenate([wv, wq], axis=1).astype(jnp.bfloat16)    # (C, 2C)
    b_kv = jnp.concatenate([bk, bv]).reshape(1, 2 * C).astype(jnp.float32)
    b_vq = jnp.concatenate([bv, bq]).reshape(1, 2 * C).astype(jnp.float32)
    wln = jnp.transpose(w_ln).astype(jnp.bfloat16)                    # (C, C)
    bln = b_ln.reshape(1, C).astype(jnp.float32)

    vmem_limit = _vmem_limit_bytes()
    out_itemsize = jnp.dtype(out_dtype).itemsize
    if tile_n is None:
        tile_n, n_pad = _pick_tile_n(N, C, out_itemsize, vmem_limit)
    else:
        assert tile_n % 8 == 0, "tile_n must be a multiple of 8"
        n_pad = -(-N // tile_n) * tile_n
    chunk = _pick_chunk(tile_n)
    mask_rows = n_pad != N

    x_in = jnp.pad(x, ((0, 0), (0, n_pad - N), (0, 0))) if mask_rows else x
    nt = n_pad // tile_n

    # ---- Pass 1: per-batch (C, C) kv + (1, C) column sum-of-squares. ----
    kv, colsq = pl.pallas_call(
        functools.partial(_kv_pass_kernel, dim=C, chunk=chunk, tile_n=tile_n,
                          n_valid=N, mask_rows=mask_rows),
        out_shape=(jax.ShapeDtypeStruct((B, C, C), jnp.float32),
                   jax.ShapeDtypeStruct((B, 1, C), jnp.float32)),
        grid_spec=pltpu.PrefetchScalarGridSpec(
            num_scalar_prefetch=0,
            grid=(B, nt),
            in_specs=[
                pl.BlockSpec((None, tile_n, C), lambda b, n: (b, n, 0)),  # x
                pl.BlockSpec((C, 2 * C), lambda b, n: (0, 0)),            # [Wk|Wv]
                pl.BlockSpec((1, 2 * C), lambda b, n: (0, 0)),            # [bk|bv]
            ],
            out_specs=(pl.BlockSpec((None, C, C), lambda b, n: (b, 0, 0)),
                       pl.BlockSpec((None, 1, C), lambda b, n: (b, 0, 0))),
        ),
        compiler_params=pltpu.CompilerParams(
            dimension_semantics=("parallel", "arbitrary"),
            vmem_limit_bytes=vmem_limit),
    )(x_in, w_kv, b_kv)
    # TODO(synk): on v7x (2 TensorCores) with B == 1, split the N reduction of
    # pass 1 across cores (grid (B, 2, nt//2) + partial-kv combine) so one core
    # is not idle; no effect on v5e/v6e.

    # ---- Pass 2: per-tile output (all grid axes independent / parallel). ----
    out = pl.pallas_call(
        functools.partial(_out_pass_kernel, dim=C, chunk=chunk, tile_n=tile_n,
                          inv_sqrt_n=1.0 / math.sqrt(N)),
        out_shape=jax.ShapeDtypeStruct((B, n_pad, C), out_dtype),
        grid_spec=pltpu.PrefetchScalarGridSpec(
            num_scalar_prefetch=0,
            grid=(B, nt),
            in_specs=[
                pl.BlockSpec((None, tile_n, C), lambda b, n: (b, n, 0)),  # x
                pl.BlockSpec((None, C, C), lambda b, n: (b, 0, 0)),       # kv
                pl.BlockSpec((None, 1, C), lambda b, n: (b, 0, 0)),       # colsq
                pl.BlockSpec((C, 2 * C), lambda b, n: (0, 0)),            # [Wv|Wq]
                pl.BlockSpec((1, 2 * C), lambda b, n: (0, 0)),            # [bv|bq]
                pl.BlockSpec((C, C), lambda b, n: (0, 0)),                # Wln
                pl.BlockSpec((1, C), lambda b, n: (0, 0)),                # bln
            ],
            out_specs=pl.BlockSpec((None, tile_n, C), lambda b, n: (b, n, 0)),
        ),
        compiler_params=pltpu.CompilerParams(
            dimension_semantics=("parallel", "parallel"),
            vmem_limit_bytes=vmem_limit),
    )(x_in, kv, colsq, w_vq, b_vq, wln, bln)

    if mask_rows:
        out = out[:, :N, :]
    return out


def essattn_reference(x, w_qkv, b_qkv, w_ln, b_ln):
    """Pure-JAX f32 reference matching the PyTorch module semantics."""
    B, N, C = x.shape
    qkv = x @ w_qkv.T + b_qkv
    q, k, v = qkv[..., :C], qkv[..., C:2 * C], qkv[..., 2 * C:]
    q = q - jnp.mean(q, axis=2, keepdims=True)
    k = k - jnp.mean(k, axis=2, keepdims=True)
    q2 = q ** 2
    q2s = jnp.sum(q2, axis=2, keepdims=True)
    k2 = k ** 2
    k2s = jnp.sum(k2, axis=2, keepdims=True)
    k2n = k2 / (k2s + 1e-7)
    k2n = k2n / jnp.maximum(
        jnp.sqrt(jnp.sum(k2n * k2n, axis=-2, keepdims=True)), 1e-12)
    q2n = q2 / (q2s + 1e-7)
    q2n = q2n / jnp.maximum(
        jnp.sqrt(jnp.sum(q2n * q2n, axis=-1, keepdims=True)), 1e-12)
    t2 = jnp.einsum("bnc,bcd->bnd", q2n,
                    jnp.einsum("bnc,bnd->bcd", k2n, v)) / math.sqrt(N)
    attn = v + t2
    return attn @ w_ln.T + b_ln


if __name__ == "__main__":
    C = 128
    key = jax.random.PRNGKey(0)
    k0, k1, k2, k3, k4, k5 = jax.random.split(key, 6)

    # PyTorch Linear default init: uniform(-1/sqrt(in_features), +1/sqrt(...)).
    bound = 1.0 / math.sqrt(C)
    w_qkv = jax.random.uniform(k0, (3 * C, C), jnp.float32, -bound, bound)
    b_qkv = jax.random.uniform(k1, (3 * C,), jnp.float32, -bound, bound)
    w_ln = jax.random.uniform(k2, (C, C), jnp.float32, -bound, bound)
    b_ln = jax.random.uniform(k3, (C,), jnp.float32, -bound, bound)

    # Check 1: clean shapes, auto tile (tile_n=512, chunk=256 -> exercises the
    # in-kernel sub-chunk loop).
    x1 = jax.random.normal(k4, (2, 512, C), jnp.float32)
    out1 = jax.block_until_ready(essattn_pallas(x1, w_qkv, b_qkv, w_ln, b_ln))
    ref1 = essattn_reference(x1, w_qkv, b_qkv, w_ln, b_ln)
    np.testing.assert_allclose(np.asarray(out1), np.asarray(ref1),
                               rtol=4e-2, atol=4e-2)

    # Check 2: awkward N with an explicit small tile to exercise the padded /
    # masked multi-step reduction path (correctness check, not a perf config).
    x2 = jax.random.normal(k5, (1, 200, C), jnp.float32)
    out2 = jax.block_until_ready(
        essattn_pallas(x2, w_qkv, b_qkv, w_ln, b_ln, tile_n=64))
    ref2 = essattn_reference(x2, w_qkv, b_qkv, w_ln, b_ln)
    np.testing.assert_allclose(np.asarray(out2), np.asarray(ref2),
                               rtol=4e-2, atol=4e-2)

    print("KERNEL_OK")
</pallas_src>

<mosaic_0001>
module attributes {stable_mosaic.version = 11 : i64} {
  func.func @_kv_pass_kernel(%arg0: i32, %arg1: i32, %arg2: memref<1x512x128xf32, #tpu.memory_space<vmem>>, %arg3: memref<128x256xbf16, #tpu.memory_space<vmem>>, %arg4: memref<1x256xf32, #tpu.memory_space<vmem>>, %arg5: memref<1x128x128xf32, #tpu.memory_space<vmem>>, %arg6: memref<1x1x128xf32, #tpu.memory_space<vmem>>) attributes {dimension_semantics = [#tpu.dimension_semantics<parallel>, #tpu.dimension_semantics<arbitrary>], iteration_bounds = array<i64: 2, 1>, scalar_prefetch = 0 : i64, scratch_operands = 0 : i64, tpu.core_type = #tpu.core_type<tc>, window_params = [{transform_indices = @transform_0, window_bounds = array<i64: 1, 512, 128>}, {pipeline_mode = #tpu.pipeline_mode<synchronous>, transform_indices = @transform_1, window_bounds = array<i64: 128, 256>}, {pipeline_mode = #tpu.pipeline_mode<synchronous>, transform_indices = @transform_2, window_bounds = array<i64: 1, 256>}, {transform_indices = @transform_3, window_bounds = array<i64: 1, 128, 128>}, {transform_indices = @transform_4, window_bounds = array<i64: 1, 1, 128>}]} {
    %c0_i32 = arith.constant 0 : i32
    %0 = arith.cmpi eq, %arg1, %c0_i32 : i32
    %1 = arith.extui %0 : i1 to i32
    %c0_i32_0 = arith.constant 0 : i32
    %2 = arith.cmpi ne, %1, %c0_i32_0 : i32
    scf.if %2 {
      %cst_47 = arith.constant 0.000000e+00 : f32
      %81 = vector.broadcast %cst_47 : f32 to vector<128x128xf32>
      %c0_48 = arith.constant 0 : index
      %c0_49 = arith.constant 0 : index
      %c0_50 = arith.constant 0 : index
      %82 = vector.load %arg5[%c0_48, %c0_49, %c0_50] : memref<1x128x128xf32, #tpu.memory_space<vmem>>, vector<1x128x128xf32>
      %83 = vector.shape_cast %82 : vector<1x128x128xf32> to vector<128x128xf32>
      %84 = vector.shape_cast %81 : vector<128x128xf32> to vector<1x128x128xf32>
      tpu.vector_store %arg5[%c0_48, %c0_49, %c0_50], %84 {strides = array<i32>} : memref<1x128x128xf32, #tpu.memory_space<vmem>>, vector<1x128x128xf32>,
      %cst_51 = arith.constant 0.000000e+00 : f32
      %85 = vector.broadcast %cst_51 : f32 to vector<1x128xf32>
      %c0_52 = arith.constant 0 : index
      %c0_53 = arith.constant 0 : index
      %c0_54 = arith.constant 0 : index
      %86 = vector.load %arg6[%c0_52, %c0_53, %c0_54] : memref<1x1x128xf32, #tpu.memory_space<vmem>>, vector<1x1x128xf32>
      %87 = vector.shape_cast %86 : vector<1x1x128xf32> to vector<1x128xf32>
      %88 = vector.shape_cast %85 : vector<1x128xf32> to vector<1x1x128xf32>
      tpu.vector_store %arg6[%c0_52, %c0_53, %c0_54], %88 {strides = array<i32>} : memref<1x1x128xf32, #tpu.memory_space<vmem>>, vector<1x1x128xf32>,
    } else {
    }
    %c0_i32_1 = arith.constant 0 : i32
    %c256_i32 = arith.constant 256 : i32
    %3 = arith.muli %c0_i32_1, %c256_i32 : i32
    %4 = tpu.assume_multiple %3, 256 : i32
    %c0 = arith.constant 0 : index
    %5 = arith.index_cast %4 : i32 to index
    %c0_2 = arith.constant 0 : index
    %6 = vector.load %arg2[%c0, %5, %c0_2] : memref<1x512x128xf32, #tpu.memory_space<vmem>>, vector<1x256x128xf32>
    %7 = vector.shape_cast %6 : vector<1x256x128xf32> to vector<256x128xf32>
    %8 = arith.truncf %7 : vector<256x128xf32> to vector<256x128xbf16>
    %c0_3 = arith.constant 0 : index
    %c0_4 = arith.constant 0 : index
    %9 = vector.load %arg3[%c0_3, %c0_4] : memref<128x256xbf16, #tpu.memory_space<vmem>>, vector<128x256xbf16>
    %cst = arith.constant dense<0.000000e+00> : vector<256x256xf32>
    %10 = tpu.matmul %8, %9, %cst {dimension_numbers = #tpu.dot_dimension_numbers<[1], [0], [0], [1], [0, 0, 1, 1], [], []>} : vector<256x128xbf16>, vector<128x256xbf16>, vector<256x256xf32> -> vector<256x256xf32>
    %c0_5 = arith.constant 0 : index
    %c0_6 = arith.constant 0 : index
    %11 = vector.load %arg4[%c0_5, %c0_6] : memref<1x256xf32, #tpu.memory_space<vmem>>, vector<1x256xf32>
    %12 = vector.broadcast %11 : vector<1x256xf32> to vector<256x256xf32>
    %13 = arith.addf %10, %12 : vector<256x256xf32>
    %14 = vector.extract_strided_slice %13 {offsets = [0, 0], sizes = [256, 128], strides = [1, 1]} : vector<256x256xf32> to vector<256x128xf32>
    %15 = vector.extract_strided_slice %13 {offsets = [0, 128], sizes = [256, 128], strides = [1, 1]} : vector<256x256xf32> to vector<256x128xf32>
    %16 = arith.mulf %14, %14 : vector<256x128xf32>
    %cst_7 = arith.constant dense<0.000000e+00> : vector<256xf32>
    %17 = vector.multi_reduction <add>, %16, %cst_7 [1] : vector<256x128xf32> to vector<256xf32>
    %18 = vector.shape_cast %17 : vector<256xf32> to vector<256x1xf32>
    %cst_8 = arith.constant 1.000000e-07 : f32
    %19 = vector.broadcast %cst_8 : f32 to vector<256x1xf32>
    %20 = arith.addf %18, %19 : vector<256x1xf32>
    %21 = tpu.reciprocal %20 {approx = true} : vector<256x1xf32> -> vector<256x1xf32>
    %22 = vector.broadcast %21 : vector<256x1xf32> to vector<256x128xf32>
    %23 = arith.mulf %16, %22 : vector<256x128xf32>
    %c0_9 = arith.constant 0 : index
    %c0_10 = arith.constant 0 : index
    %c0_11 = arith.constant 0 : index
    %24 = vector.load %arg5[%c0_9, %c0_10, %c0_11] : memref<1x128x128xf32, #tpu.memory_space<vmem>>, vector<1x128x128xf32>
    %25 = vector.shape_cast %24 : vector<1x128x128xf32> to vector<128x128xf32>
    %26 = arith.truncf %23 : vector<256x128xf32> to vector<256x128xbf16>
    %27 = arith.truncf %15 : vector<256x128xf32> to vector<256x128xbf16>
    %cst_12 = arith.constant dense<0.000000e+00> : vector<128x128xf32>
    %28 = tpu.matmul %26, %27, %cst_12 {dimension_numbers = #tpu.dot_dimension_numbers<[0], [0], [1], [1], [0, 1, 1, 1], [], []>} : vector<256x128xbf16>, vector<256x128xbf16>, vector<128x128xf32> -> vector<128x128xf32>
    %29 = arith.addf %25, %28 : vector<128x128xf32>
    %c0_13 = arith.constant 0 : index
    %c0_14 = arith.constant 0 : index
    %c0_15 = arith.constant 0 : index
    %30 = vector.load %arg5[%c0_13, %c0_14, %c0_15] : memref<1x128x128xf32, #tpu.memory_space<vmem>>, vector<1x128x128xf32>
    %31 = vector.shape_cast %30 : vector<1x128x128xf32> to vector<128x128xf32>
    %32 = vector.shape_cast %29 : vector<128x128xf32> to vector<1x128x128xf32>
    tpu.vector_store %arg5[%c0_13, %c0_14, %c0_15], %32 {strides = array<i32>} : memref<1x128x128xf32, #tpu.memory_space<vmem>>, vector<1x128x128xf32>,
    %c0_16 = arith.constant 0 : index
    %c0_17 = arith.constant 0 : index
    %c0_18 = arith.constant 0 : index
    %33 = vector.load %arg6[%c0_16, %c0_17, %c0_18] : memref<1x1x128xf32, #tpu.memory_space<vmem>>, vector<1x1x128xf32>
    %34 = vector.shape_cast %33 : vector<1x1x128xf32> to vector<1x128xf32>
    %35 = arith.mulf %23, %23 : vector<256x128xf32>
    %cst_19 = arith.constant dense<0.000000e+00> : vector<128xf32>
    %36 = vector.multi_reduction <add>, %35, %cst_19 [0] : vector<256x128xf32> to vector<128xf32>
    %37 = vector.shape_cast %36 : vector<128xf32> to vector<1x128xf32>
    %38 = arith.addf %34, %37 : vector<1x128xf32>
    %c0_20 = arith.constant 0 : index
    %c0_21 = arith.constant 0 : index
    %c0_22 = arith.constant 0 : index
    %39 = vector.load %arg6[%c0_20, %c0_21, %c0_22] : memref<1x1x128xf32, #tpu.memory_space<vmem>>, vector<1x1x128xf32>
    %40 = vector.shape_cast %39 : vector<1x1x128xf32> to vector<1x128xf32>
    %41 = vector.shape_cast %38 : vector<1x128xf32> to vector<1x1x128xf32>
    tpu.vector_store %arg6[%c0_20, %c0_21, %c0_22], %41 {strides = array<i32>} : memref<1x1x128xf32, #tpu.memory_space<vmem>>, vector<1x1x128xf32>,
    %c1_i32 = arith.constant 1 : i32
    %c256_i32_23 = arith.constant 256 : i32
    %42 = arith.muli %c1_i32, %c256_i32_23 : i32
    %43 = tpu.assume_multiple %42, 256 : i32
    %c0_24 = arith.constant 0 : index
    %44 = arith.index_cast %43 : i32 to index
    %c0_25 = arith.constant 0 : index
    %45 = vector.load %arg2[%c0_24, %44, %c0_25] : memref<1x512x128xf32, #tpu.memory_space<vmem>>, vector<1x256x128xf32>
    %46 = vector.shape_cast %45 : vector<1x256x128xf32> to vector<256x128xf32>
    %47 = arith.truncf %46 : vector<256x128xf32> to vector<256x128xbf16>
    %c0_26 = arith.constant 0 : index
    %c0_27 = arith.constant 0 : index
    %48 = vector.load %arg3[%c0_26, %c0_27] : memref<128x256xbf16, #tpu.memory_space<vmem>>, vector<128x256xbf16>
    %cst_28 = arith.constant dense<0.000000e+00> : vector<256x256xf32>
    %49 = tpu.matmul %47, %48, %cst_28 {dimension_numbers = #tpu.dot_dimension_numbers<[1], [0], [0], [1], [0, 0, 1, 1], [], []>} : vector<256x128xbf16>, vector<128x256xbf16>, vector<256x256xf32> -> vector<256x256xf32>
    %c0_29 = arith.constant 0 : index
    %c0_30 = arith.constant 0 : index
    %50 = vector.load %arg4[%c0_29, %c0_30] : memref<1x256xf32, #tpu.memory_space<vmem>>, vector<1x256xf32>
    %51 = vector.broadcast %50 : vector<1x256xf32> to vector<256x256xf32>
    %52 = arith.addf %49, %51 : vector<256x256xf32>
    %53 = vector.extract_strided_slice %52 {offsets = [0, 0], sizes = [256, 128], strides = [1, 1]} : vector<256x256xf32> to vector<256x128xf32>
    %54 = vector.extract_strided_slice %52 {offsets = [0, 128], sizes = [256, 128], strides = [1, 1]} : vector<256x256xf32> to vector<256x128xf32>
    %55 = arith.mulf %53, %53 : vector<256x128xf32>
    %cst_31 = arith.constant dense<0.000000e+00> : vector<256xf32>
    %56 = vector.multi_reduction <add>, %55, %cst_31 [1] : vector<256x128xf32> to vector<256xf32>
    %57 = vector.shape_cast %56 : vector<256xf32> to vector<256x1xf32>
    %cst_32 = arith.constant 1.000000e-07 : f32
    %58 = vector.broadcast %cst_32 : f32 to vector<256x1xf32>
    %59 = arith.addf %57, %58 : vector<256x1xf32>
    %60 = tpu.reciprocal %59 {approx = true} : vector<256x1xf32> -> vector<256x1xf32>
    %61 = vector.broadcast %60 : vector<256x1xf32> to vector<256x128xf32>
    %62 = arith.mulf %55, %61 : vector<256x128xf32>
    %c0_33 = arith.constant 0 : index
    %c0_34 = arith.constant 0 : index
    %c0_35 = arith.constant 0 : index
    %63 = vector.load %arg5[%c0_33, %c0_34, %c0_35] : memref<1x128x128xf32, #tpu.memory_space<vmem>>, vector<1x128x128xf32>
    %64 = vector.shape_cast %63 : vector<1x128x128xf32> to vector<128x128xf32>
    %65 = arith.truncf %62 : vector<256x128xf32> to vector<256x128xbf16>
    %66 = arith.truncf %54 : vector<256x128xf32> to vector<256x128xbf16>
    %cst_36 = arith.constant dense<0.000000e+00> : vector<128x128xf32>
    %67 = tpu.matmul %65, %66, %cst_36 {dimension_numbers = #tpu.dot_dimension_numbers<[0], [0], [1], [1], [0, 1, 1, 1], [], []>} : vector<256x128xbf16>, vector<256x128xbf16>, vector<128x128xf32> -> vector<128x128xf32>
    %68 = arith.addf %64, %67 : vector<128x128xf32>
    %c0_37 = arith.constant 0 : index
    %c0_38 = arith.constant 0 : index
    %c0_39 = arith.constant 0 : index
    %69 = vector.load %arg5[%c0_37, %c0_38, %c0_39] : memref<1x128x128xf32, #tpu.memory_space<vmem>>, vector<1x128x128xf32>
    %70 = vector.shape_cast %69 : vector<1x128x128xf32> to vector<128x128xf32>
    %71 = vector.shape_cast %68 : vector<128x128xf32> to vector<1x128x128xf32>
    tpu.vector_store %arg5[%c0_37, %c0_38, %c0_39], %71 {strides = array<i32>} : memref<1x128x128xf32, #tpu.memory_space<vmem>>, vector<1x128x128xf32>,
    %c0_40 = arith.constant 0 : index
    %c0_41 = arith.constant 0 : index
    %c0_42 = arith.constant 0 : index
    %72 = vector.load %arg6[%c0_40, %c0_41, %c0_42] : memref<1x1x128xf32, #tpu.memory_space<vmem>>, vector<1x1x128xf32>
    %73 = vector.shape_cast %72 : vector<1x1x128xf32> to vector<1x128xf32>
    %74 = arith.mulf %62, %62 : vector<256x128xf32>
    %cst_43 = arith.constant dense<0.000000e+00> : vector<128xf32>
    %75 = vector.multi_reduction <add>, %74, %cst_43 [0] : vector<256x128xf32> to vector<128xf32>
    %76 = vector.shape_cast %75 : vector<128xf32> to vector<1x128xf32>
    %77 = arith.addf %73, %76 : vector<1x128xf32>
    %c0_44 = arith.constant 0 : index
    %c0_45 = arith.constant 0 : index
    %c0_46 = arith.constant 0 : index
    %78 = vector.load %arg6[%c0_44, %c0_45, %c0_46] : memref<1x1x128xf32, #tpu.memory_space<vmem>>, vector<1x1x128xf32>
    %79 = vector.shape_cast %78 : vector<1x1x128xf32> to vector<1x128xf32>
    %80 = vector.shape_cast %77 : vector<1x128xf32> to vector<1x1x128xf32>
    tpu.vector_store %arg6[%c0_44, %c0_45, %c0_46], %80 {strides = array<i32>} : memref<1x1x128xf32, #tpu.memory_space<vmem>>, vector<1x1x128xf32>,
    %c2_i32 = arith.constant 2 : i32
    return
  }
  func.func @transform_0(%arg0: i32, %arg1: i32) -> (i32, i32, i32) {
    %c0_i32 = arith.constant 0 : i32
    %c0_i32_0 = arith.constant 0 : i32
    return %arg0, %arg1, %c0_i32 : i32, i32, i32
  }
  func.func @transform_1(%arg0: i32, %arg1: i32) -> (i32, i32) {
    %c0_i32 = arith.constant 0 : i32
    %c0_i32_0 = arith.constant 0 : i32
    %c0_i32_1 = arith.constant 0 : i32
    return %c0_i32, %c0_i32_0 : i32, i32
  }
  func.func @transform_2(%arg0: i32, %arg1: i32) -> (i32, i32) {
    %c0_i32 = arith.constant 0 : i32
    %c0_i32_0 = arith.constant 0 : i32
    %c0_i32_1 = arith.constant 0 : i32
    return %c0_i32, %c0_i32_0 : i32, i32
  }
  func.func @transform_3(%arg0: i32, %arg1: i32) -> (i32, i32, i32) {
    %c0_i32 = arith.constant 0 : i32
    %c0_i32_0 = arith.constant 0 : i32
    %c0_i32_1 = arith.constant 0 : i32
    return %arg0, %c0_i32, %c0_i32_0 : i32, i32, i32
  }
  func.func @transform_4(%arg0: i32, %arg1: i32) -> (i32, i32, i32) {
    %c0_i32 = arith.constant 0 : i32
    %c0_i32_0 = arith.constant 0 : i32
    %c0_i32_1 = arith.constant 0 : i32
    return %arg0, %c0_i32, %c0_i32_0 : i32, i32, i32
  }
}

</mosaic_0001>

<llo_original>
// kernel: tpu_custom_call.1
$region0: #{tpu_custom_call.1}
  #allocation0 [shape = 'u32[]', space=smem, size = 0x4, offset = 0x4, fixed_abs, tag = 'smem constant byte address 0x4 - core index']
  #allocation1 [shape = 'u32[144,128]{1,0:T(1,128)}', space=vmem, size = 0x12000, scoped, tag = 'internal scratch']
  %s0 = inlined_call_operand.hbm [shape: f32[2,512,128], index: 0, kind: input, shape index: {}]
  %s1 = inlined_call_operand.hbm [shape: bf16[128,256], index: 1, kind: input, shape index: {}]
  %s2 = inlined_call_operand.vmem [shape: f32[1,256], index: 2, kind: input, shape index: {}]
  %s3 = inlined_call_operand.hbm [shape: f32[2,128,128], index: 3, kind: output, shape index: {0}]
  %s4 = inlined_call_operand.hbm [shape: f32[2,1,128], index: 4, kind: output, shape index: {1}]
  %5 = xla_tuple %s3, %s4
  %s6 = sld [smem:[#allocation0]]
  $region65: #{tpu_custom_call.1} parent=0
    _
  %s8 = ssub.s32 1, %s6
  %s9 = scalar_select 0, %s8, %s6
  $region1: #{tpu_custom_call.1} parent=0
    #allocation2 [shape = 'u8[524288]{0}', space=vmem, size = 0x80000, scoped, tag = 'input window, operand 0']
    #allocation3 [shape = 's32[2]{0}', space=sflag, size = 0x8, scoped, tag = 'scoped memory for tpu_custom_call.1']
    #allocation4 [shape = 's32[2]{0}', space=sflag, size = 0x8, scoped, tag = 'scoped memory for tpu_custom_call.1']
    #allocation5 [shape = 'u8[65536]{0}', space=vmem, size = 0x10000, scoped, tag = 'input window, operand 1, single buffered']
    #allocation6 [shape = 's32[1]{0}', space=sflag, size = 0x4, scoped, tag = 'scoped memory for tpu_custom_call.1']
    #allocation7 [shape = 'u8[131072]{0}', space=vmem, size = 0x20000, scoped, tag = 'output window, operand 0']
    #allocation8 [shape = 'u8[1024]{0}', space=vmem, size = 0x400, scoped, tag = 'output window, operand 1']
    #allocation9 [shape = 's32[2]{0}', space=sflag, size = 0x8, scoped, tag = 'scoped memory for tpu_custom_call.1']
    %10 = vsyncpa [#allocation3], 0
    %s11 = scalar_lea.sflag [#allocation3], 1
    %12 = vsyncpa %s11, 0
    %13 = vsyncpa [#allocation6], 0
    %14 = vsyncpa [#allocation4], 0
    %s15 = scalar_lea.sflag [#allocation4], 1
    %16 = vsyncpa %s15, 0
    %17 = vsyncpa [#allocation9], 0
    %s18 = scalar_lea.sflag [#allocation9], 1
    %19 = vsyncpa %s18, 0
    loop: start=0, step=1, limit=4
    $region2: #{tpu_custom_call.1} parent=1 // loop_pre_header
      _
    $region3: #{tpu_custom_call.1} parent=1 // loop_header
      %s21 = sphi 0, %s25
      %p22 = scmp.ge.s32.totalorder %s21, 4
      %s28 = sphi 0, %s40
      %s29 = sphi 0, %s36
      %s30 = sphi 0, %s28
      %s31 = sphi 0, %s29
      %s32 = sphi 0, %s30
      %s33 = sphi 0, %s31
      %s45 = sphi 0, %s47
      %s48 = sphi 0, %s45
      %s49 = sphi 0, %s48
      %s65 = sphi 0, %s49
      %s69 = sphi 0, %s69
      %s71 = sphi 0, %s69
      %s72 = sphi 0, %s71
      %s86 = sphi 0, %s72
      %s90 = sphi 0, %s90
      %s92 = sphi 0, %s90
      %s93 = sphi 0, %s92
      %s107 = sphi 0, %s93
      %s113 = sphi 0, %s115
      %s116 = sphi 0, %s113
      %s117 = sphi 0, %s116
      %s133 = sphi 0, %s117
      %s139 = sphi 0, %s141
      %s142 = sphi 0, %s139
      %s143 = sphi 0, %s142
      %s159 = sphi 0, %s143
    $region4: #{tpu_custom_call.1} parent=1 // loop_header_branch
      %24 = sbr.rel (%p22) target = $region8
    $region5: #{tpu_custom_call.1} parent=1 // loop_body
      %s26 = ssub.s32 %s21, 1
      %s27 = ssub.s32 %s21, 2
      %s34 = sadd.s32 1, %s29
      %p35 = scmp.ge.s32.totalorder %s34, 1
      %s36 = scalar_select %p35, 0, %s34
      %s37 = sadd.s32 1, %s28
      %s38 = scalar_select %p35, %s37, %s28
      %p39 = scmp.ge.s32.totalorder %s38, 2
      %s40 = scalar_select %p39, 0, %s38
      %s41 = ssub.s32 %s28, %s40
      %s42 = ssub.s32 %s29, %s36
      %s43 = sor.u32 %s41, %s42
      %p44 = scmp.eq.s32.totalorder %s43, 0
      %s46 = sadd.s32 %s45, 1
      %s47 = scalar_select %p44, %s45, %s46
      %p50 = pneg %p44
      %p51 = scmp.eq.s32.totalorder %s21, 1
      %p52 = por %p50, %p51
      %p53 = scmp.ne.s32.totalorder %s45, %s48
      %p54 = scmp.eq.s32.totalorder %s21, 0
      %p55 = por %p53, %p54
      %p56 = scmp.ne.s32.totalorder %s45, %s48
      %p57 = scmp.eq.s32.totalorder %s26, 1
      %p58 = por %p56, %p57
      %p59 = scmp.ne.s32.totalorder %s48, %s49
      %p60 = scmp.eq.s32.totalorder %s26, 0
      %p61 = por %p59, %p60
      %p62 = scmp.ne.s32.totalorder %s48, %s49
      %p63 = scmp.eq.s32.totalorder %s27, 1
      %p64 = por %p62, %p63
      %p66 = scmp.ne.s32.totalorder %s49, %s65
      %p67 = scmp.eq.s32.totalorder %s27, 0
      %p68 = por %p66, %p67
      %s70 = sadd.s32 %s69, 1
      %p73 = scmp.eq.s32.totalorder %s21, 1
      %p74 = scmp.ne.s32.totalorder %s69, %s71
      %p75 = scmp.eq.s32.totalorder %s21, 0
      %p76 = por %p74, %p75
      %p77 = scmp.ne.s32.totalorder %s69, %s71
      %p78 = scmp.eq.s32.totalorder %s26, 1
      %p79 = por %p77, %p78
      %p80 = scmp.ne.s32.totalorder %s71, %s72
      %p81 = scmp.eq.s32.totalorder %s26, 0
      %p82 = por %p80, %p81
      %p83 = scmp.ne.s32.totalorder %s71, %s72
      %p84 = scmp.eq.s32.totalorder %s27, 1
      %p85 = por %p83, %p84
      %p87 = scmp.ne.s32.totalorder %s72, %s86
      %p88 = scmp.eq.s32.totalorder %s27, 0
      %p89 = por %p87, %p88
      %s91 = sadd.s32 %s90, 1
      %p94 = scmp.eq.s32.totalorder %s21, 1
      %p95 = scmp.ne.s32.totalorder %s90, %s92
      %p96 = scmp.eq.s32.totalorder %s21, 0
      %p97 = por %p95, %p96
      %p98 = scmp.ne.s32.totalorder %s90, %s92
      %p99 = scmp.eq.s32.totalorder %s26, 1
      %p100 = por %p98, %p99
      %p101 = scmp.ne.s32.totalorder %s92, %s93
      %p102 = scmp.eq.s32.totalorder %s26, 0
      %p103 = por %p101, %p102
      %p104 = scmp.ne.s32.totalorder %s92, %s93
      %p105 = scmp.eq.s32.totalorder %s27, 1
      %p106 = por %p104, %p105
      %p108 = scmp.ne.s32.totalorder %s93, %s107
      %p109 = scmp.eq.s32.totalorder %s27, 0
      %p110 = por %p108, %p109
      %s111 = ssub.s32 %s28, %s40
      %p112 = scmp.eq.s32.totalorder %s111, 0
      %s114 = sadd.s32 %s113, 1
      %s115 = scalar_select %p112, %s113, %s114
      %p118 = pneg %p112
      %p119 = scmp.eq.s32.totalorder %s21, 1
      %p120 = por %p118, %p119
      %p121 = scmp.ne.s32.totalorder %s113, %s116
      %p122 = scmp.eq.s32.totalorder %s21, 0
      %p123 = por %p121, %p122
      %p124 = scmp.ne.s32.totalorder %s113, %s116
      %p125 = scmp.eq.s32.totalorder %s26, 1
      %p126 = por %p124, %p125
      %p127 = scmp.ne.s32.totalorder %s116, %s117
      %p128 = scmp.eq.s32.totalorder %s26, 0
      %p129 = por %p127, %p128
      %p130 = scmp.ne.s32.totalorder %s116, %s117
      %p131 = scmp.eq.s32.totalorder %s27, 1
      %p132 = por %p130, %p131
      %p134 = scmp.ne.s32.totalorder %s117, %s133
      %p135 = scmp.eq.s32.totalorder %s27, 0
      %p136 = por %p134, %p135
      %s137 = ssub.s32 %s28, %s40
      %p138 = scmp.eq.s32.totalorder %s137, 0
      %s140 = sadd.s32 %s139, 1
      %s141 = scalar_select %p138, %s139, %s140
      %p144 = pneg %p138
      %p145 = scmp.eq.s32.totalorder %s21, 1
      %p146 = por %p144, %p145
      %p147 = scmp.ne.s32.totalorder %s139, %s142
      %p148 = scmp.eq.s32.totalorder %s21, 0
      %p149 = por %p147, %p148
      %p150 = scmp.ne.s32.totalorder %s139, %s142
      %p151 = scmp.eq.s32.totalorder %s26, 1
      %p152 = por %p150, %p151
      %p153 = scmp.ne.s32.totalorder %s142, %s143
      %p154 = scmp.eq.s32.totalorder %s26, 0
      %p155 = por %p153, %p154
      %p156 = scmp.ne.s32.totalorder %s142, %s143
      %p157 = scmp.eq.s32.totalorder %s27, 1
      %p158 = por %p156, %p157
      %p160 = scmp.ne.s32.totalorder %s143, %s159
      %p161 = scmp.eq.s32.totalorder %s27, 0
      %p162 = por %p160, %p161
      %p163 = scmp.le.s32.totalorder 1, %s21
      %p164 = scmp.lt.s32.totalorder %s21, 3
      %p165 = pnand %p163, %p164
      %p166 = pneg %p165
      // Predicated region
      $region9: #{tpu_custom_call.1} parent=5 // pred_check
        _
      $region10: #{tpu_custom_call.1} parent=5 // pred_check_branch
        %168 = sbr.rel (%p165) target = $region12
      $region11: #{tpu_custom_call.1} parent=5 // pred_region
        %s169 = ssub.s32 %s21, 1
        // Predicated region
        $region13: #{tpu_custom_call.1} parent=11 // pred_check
          %p170 = pneg %p82
        $region14: #{tpu_custom_call.1} parent=11 // pred_check_branch
          %172 = sbr.rel (%p170) target = $region16
        $region15: #{tpu_custom_call.1} parent=11 // pred_region
          %s174 = ssub.s32 2048, 2048
          %175 = vsyncadd [#allocation6], %s174
          %s176 = sshll.u32 [#allocation5], 4
          %s177 = int_to_ptr.vmem [resolvable:$true] %s176
          %182 = dma.hbm_to_vmem [thread:$0]  %s1, 2048, %s177, [#allocation6], 128, 128, 8
        $region16: #{tpu_custom_call.1} parent=11 // pred_fallthru
          _
        // Predicated region
        $region17: #{tpu_custom_call.1} parent=11 // pred_check
          %p183 = pneg %p103
        $region18: #{tpu_custom_call.1} parent=11 // pred_check_branch
          %185 = sbr.rel (%p183) target = $region20
        $region19: #{tpu_custom_call.1} parent=11 // pred_region
          _
        $region20: #{tpu_custom_call.1} parent=11 // pred_fallthru
          _
      $region12: #{tpu_custom_call.1} parent=5 // pred_fallthru
        _
      %p186 = scmp.lt.s32.totalorder %s21, 2
      // Predicated region
      $region21: #{tpu_custom_call.1} parent=5 // pred_check
        %p187 = pneg %p186
      $region22: #{tpu_custom_call.1} parent=5 // pred_check_branch
        %189 = sbr.rel (%p187) target = $region24
      $region23: #{tpu_custom_call.1} parent=5 // pred_region
        // Predicated region
        $region25: #{tpu_custom_call.1} parent=23 // pred_check
          %p190 = pneg %p55
        $region26: #{tpu_custom_call.1} parent=23 // pred_check_branch
          %192 = sbr.rel (%p190) target = $region28
        $region27: #{tpu_custom_call.1} parent=23 // pred_region
          %s193 = sand.u32 %s45, 1
          %s194 = scalar_lea.sflag [#allocation3], %s193
          %s195 = sand.u32 %s45, 1
          %s196 = smul.addr %s195, 512
          %s197 = scalar_lea.vmem [#allocation2], %s196
          %s198 = smul.u32 64, %s29
          %s200 = ssub.s32 8192, 8192
          %201 = vsyncadd %s194, %s200
          %s202 = smul.addr %s28, 64
          %s203 = sadd.s32 %s198, %s202
          %s204 = smul.addr %s203, 128
          %s205 = scalar_lea.hbm %s0, %s204
          %s206 = sshll.u32 %s197, 4
          %s207 = int_to_ptr.vmem [resolvable:$true] %s206
          %212 = dma.hbm_to_vmem [thread:$0]  %s205, 8192, %s207, %s194, 128, 128, 8
        $region28: #{tpu_custom_call.1} parent=23 // pred_fallthru
          _
      $region24: #{tpu_custom_call.1} parent=5 // pred_fallthru
        _
      %p213 = scmp.le.s32.totalorder 1, %s21
      %p214 = scmp.lt.s32.totalorder %s21, 3
      %p215 = pnand %p213, %p214
      %p216 = pneg %p215
      // Predicated region
      $region29: #{tpu_custom_call.1} parent=5 // pred_check
        _
      $region30: #{tpu_custom_call.1} parent=5 // pred_check_branch
        %218 = sbr.rel (%p215) target = $region32
      $region31: #{tpu_custom_call.1} parent=5 // pred_region
        %s219 = ssub.s32 %s21, 1
        %s220 = sand.u32 %s48, 1
        %s221 = scalar_lea.sflag [#allocation3], %s220
        %s222 = sand.u32 %s48, 1
        %s223 = smul.addr %s222, 512
        %s224 = scalar_lea.vmem [#allocation2], %s223
        // Predicated region
        $region33: #{tpu_custom_call.1} parent=31 // pred_check
          %p225 = pneg %p61
        $region34: #{tpu_custom_call.1} parent=31 // pred_check_branch
          %227 = sbr.rel (%p225) target = $region36
        $region35: #{tpu_custom_call.1} parent=31 // pred_region
          %228 = dma.done %s221, 8192
        $region36: #{tpu_custom_call.1} parent=31 // pred_fallthru
          _
        // Predicated region
        $region37: #{tpu_custom_call.1} parent=31 // pred_check
          %p229 = pneg %p82
        $region38: #{tpu_custom_call.1} parent=31 // pred_check_branch
          %231 = sbr.rel (%p229) target = $region40
        $region39: #{tpu_custom_call.1} parent=31 // pred_region
          %232 = dma.done [#allocation6], 2048
        $region40: #{tpu_custom_call.1} parent=31 // pred_fallthru
          _
        %s233 = sand.u32 %s48, 1
        %s234 = scalar_lea.sflag [#allocation3], %s233
        %s235 = sand.u32 %s48, 1
        %s236 = smul.addr %s235, 512
        %s237 = scalar_lea.vmem [#allocation2], %s236
        %p238 = pneg %p61
        %p239 = pneg %p58
        %p240 = pneg %p82
        %p241 = pneg %p79
        %p242 = pneg %p103
        %p243 = pneg %p100
        %p244 = pneg %p129
        %p245 = pneg %p126
        %s246 = sand.u32 %s116, 1
        %s247 = scalar_lea.sflag [#allocation4], %s246
        %s248 = sand.u32 %s116, 1
        %s249 = smul.addr %s248, 128
        %s250 = scalar_lea.vmem [#allocation7], %s249
        %p251 = pneg %p155
        %p252 = pneg %p152
        %s253 = sand.u32 %s142, 1
        %s254 = scalar_lea.sflag [#allocation9], %s253
        %s255 = sand.u32 %s142, 1
        %s256 = scalar_lea.vmem [#allocation8], %s255
        %s257 = smul.u32 64, %s31
        %p259 = scmp.eq.s32.totalorder %s31, 0
        // Predicated region
        $region41: #{tpu_custom_call.1} parent=31 // pred_check
          %p260 = pneg %p259
        $region42: #{tpu_custom_call.1} parent=31 // pred_check_branch
          %262 = sbr.rel (%p260) target = $region44
        $region43: #{tpu_custom_call.1} parent=31 // pred_region
          %263 = vst [vmem:[%s250] sm:$0xff] 0.0
          %264 = vst [vmem:[%s250 + $0x8] sm:$0xff] 0.0
          %265 = vst [vmem:[%s250 + $0x10] sm:$0xff] 0.0
          %266 = vst [vmem:[%s250 + $0x18] sm:$0xff] 0.0
          %267 = vst [vmem:[%s250 + $0x20] sm:$0xff] 0.0
          %268 = vst [vmem:[%s250 + $0x28] sm:$0xff] 0.0
          %269 = vst [vmem:[%s250 + $0x30] sm:$0xff] 0.0
          %270 = vst [vmem:[%s250 + $0x38] sm:$0xff] 0.0
          %271 = vst [vmem:[%s250 + $0x40] sm:$0xff] 0.0
          %272 = vst [vmem:[%s250 + $0x48] sm:$0xff] 0.0
          %273 = vst [vmem:[%s250 + $0x50] sm:$0xff] 0.0
          %274 = vst [vmem:[%s250 + $0x58] sm:$0xff] 0.0
          %275 = vst [vmem:[%s250 + $0x60] sm:$0xff] 0.0
          %276 = vst [vmem:[%s250 + $0x68] sm:$0xff] 0.0
          %277 = vst [vmem:[%s250 + $0x70] sm:$0xff] 0.0
          %278 = vst [vmem:[%s250 + $0x78] sm:$0xff] 0.0
          %279 = vst [vmem:[%s256] sm:$0x1] 0.0
        $region44: #{tpu_custom_call.1} parent=31 // pred_fallthru
          _
        %v280 = vld [vmem:[%s224] sm:$0xff]
        %v281 = vld [vmem:[%s224 + $0x8] sm:$0xff]
        %v282 = vld [vmem:[%s224 + $0x10] sm:$0xff]
        %v283 = vld [vmem:[%s224 + $0x18] sm:$0xff]
        %v284 = vld [vmem:[%s224 + $0x20] sm:$0xff]
        %v285 = vld [vmem:[%s224 + $0x28] sm:$0xff]
        %v286 = vld [vmem:[%s224 + $0x30] sm:$0xff]
        %v287 = vld [vmem:[%s224 + $0x38] sm:$0xff]
        %v288 = vld [vmem:[%s224 + $0x40] sm:$0xff]
        %v289 = vld [vmem:[%s224 + $0x48] sm:$0xff]
        %v290 = vld [vmem:[%s224 + $0x50] sm:$0xff]
        %v291 = vld [vmem:[%s224 + $0x58] sm:$0xff]
        %v292 = vld [vmem:[%s224 + $0x60] sm:$0xff]
        %v293 = vld [vmem:[%s224 + $0x68] sm:$0xff]
        %v294 = vld [vmem:[%s224 + $0x70] sm:$0xff]
        %v295 = vld [vmem:[%s224 + $0x78] sm:$0xff]
        %v296 = vld [vmem:[%s224 + $0x80] sm:$0xff]
        %v297 = vld [vmem:[%s224 + $0x88] sm:$0xff]
        %v298 = vld [vmem:[%s224 + $0x90] sm:$0xff]
        %v299 = vld [vmem:[%s224 + $0x98] sm:$0xff]
        %v300 = vld [vmem:[%s224 + $0xa0] sm:$0xff]
        %v301 = vld [vmem:[%s224 + $0xa8] sm:$0xff]
        %v302 = vld [vmem:[%s224 + $0xb0] sm:$0xff]
        %v303 = vld [vmem:[%s224 + $0xb8] sm:$0xff]
        %v304 = vld [vmem:[%s224 + $0xc0] sm:$0xff]
        %v305 = vld [vmem:[%s224 + $0xc8] sm:$0xff]
        %v306 = vld [vmem:[%s224 + $0xd0] sm:$0xff]
        %v307 = vld [vmem:[%s224 + $0xd8] sm:$0xff]
        %v308 = vld [vmem:[%s224 + $0xe0] sm:$0xff]
        %v309 = vld [vmem:[%s224 + $0xe8] sm:$0xff]
        %v310 = vld [vmem:[%s224 + $0xf0] sm:$0xff]
        %v311 = vld [vmem:[%s224 + $0xf8] sm:$0xff]
        %v312 = vpack.c.bf16 %v281, %v280
        %v313 = vpack.c.bf16 %v283, %v282
        %v314 = vpack.c.bf16 %v285, %v284
        %v315 = vpack.c.bf16 %v287, %v286
        %v316 = vpack.c.bf16 %v289, %v288
        %v317 = vpack.c.bf16 %v291, %v290
        %v318 = vpack.c.bf16 %v293, %v292
        %v319 = vpack.c.bf16 %v295, %v294
        %v320 = vpack.c.bf16 %v297, %v296
        %v321 = vpack.c.bf16 %v299, %v298
        %v322 = vpack.c.bf16 %v301, %v300
        %v323 = vpack.c.bf16 %v303, %v302
        %v324 = vpack.c.bf16 %v305, %v304
        %v325 = vpack.c.bf16 %v307, %v306
        %v326 = vpack.c.bf16 %v309, %v308
        %v327 = vpack.c.bf16 %v311, %v310
        %v328 = vld [vmem:[#allocation5] sm:$0xff]
        %v329 = vld [vmem:[#allocation5 + $0x8] sm:$0xff]
        %v330 = vld [vmem:[#allocation5 + $0x10] sm:$0xff]
        %v331 = vld [vmem:[#allocation5 + $0x18] sm:$0xff]
        %v332 = vld [vmem:[#allocation5 + $0x20] sm:$0xff]
        %v333 = vld [vmem:[#allocation5 + $0x28] sm:$0xff]
        %v334 = vld [vmem:[#allocation5 + $0x30] sm:$0xff]
        %v335 = vld [vmem:[#allocation5 + $0x38] sm:$0xff]
        %v336 = vld [vmem:[#allocation5 + $0x40] sm:$0xff]
        %v337 = vld [vmem:[#allocation5 + $0x48] sm:$0xff]
        %v338 = vld [vmem:[#allocation5 + $0x50] sm:$0xff]
        %v339 = vld [vmem:[#allocation5 + $0x58] sm:$0xff]
        %v340 = vld [vmem:[#allocation5 + $0x60] sm:$0xff]
        %v341 = vld [vmem:[#allocation5 + $0x68] sm:$0xff]
        %v342 = vld [vmem:[#allocation5 + $0x70] sm:$0xff]
        %v343 = vld [vmem:[#allocation5 + $0x78] sm:$0xff]
        %v344 = vld [vmem:[%s2] sm:$0x3]
        %v346 = vlaneseq
        %v347 = vshrl.u32 %v346, 7
        %v348 = vsub.s32 0, %v347
        %v349 = vrot.slane %v344, %v348
        %v350 = vlaneseq
        %v351 = vshrl.u32 %v350, 7
        %v352 = vsub.s32 1, %v351
        %v353 = vrot.slane %v344, %v352
        %v372 = vunpack.c.l.b16 %v328
        %v373 = vunpack.c.h.b16 %v328
        %v374 = vunpack.c.l.b16 %v329
        %v375 = vunpack.c.h.b16 %v329
        %v376 = vunpack.c.l.b16 %v330
        %v377 = vunpack.c.h.b16 %v330
        %v378 = vunpack.c.l.b16 %v331
        %v379 = vunpack.c.h.b16 %v331
        %v380 = vunpack.c.l.b16 %v332
        %v381 = vunpack.c.h.b16 %v332
        %v382 = vunpack.c.l.b16 %v333
        %v383 = vunpack.c.h.b16 %v333
        %v384 = vunpack.c.l.b16 %v334
        %v385 = vunpack.c.h.b16 %v334
        %v386 = vunpack.c.l.b16 %v335
        %v387 = vunpack.c.h.b16 %v335
        %v388 = vunpack.c.l.b16 %v336
        %v389 = vunpack.c.h.b16 %v336
        %v390 = vunpack.c.l.b16 %v337
        %v391 = vunpack.c.h.b16 %v337
        %v392 = vunpack.c.l.b16 %v338
        %v393 = vunpack.c.h.b16 %v338
        %v394 = vunpack.c.l.b16 %v339
        %v395 = vunpack.c.h.b16 %v339
        %v396 = vunpack.c.l.b16 %v340
        %v397 = vunpack.c.h.b16 %v340
        %v398 = vunpack.c.l.b16 %v341
        %v399 = vunpack.c.h.b16 %v341
        %v400 = vunpack.c.l.b16 %v342
        %v401 = vunpack.c.h.b16 %v342
        %v402 = vunpack.c.l.b16 %v343
        %v403 = vunpack.c.h.b16 %v343
        %v404 = vpack.c.b16 %v374, %v372
        %v405 = vpack.c.b16 %v375, %v373
        %v406 = vpack.c.b16 %v378, %v376
        %v407 = vpack.c.b16 %v379, %v377
        %v408 = vpack.c.b16 %v382, %v380
        %v409 = vpack.c.b16 %v383, %v381
        %v410 = vpack.c.b16 %v386, %v384
        %v411 = vpack.c.b16 %v387, %v385
        %v412 = vpack.c.b16 %v390, %v388
        %v413 = vpack.c.b16 %v391, %v389
        %v414 = vpack.c.b16 %v394, %v392
        %v415 = vpack.c.b16 %v395, %v393
        %v416 = vpack.c.b16 %v398, %v396
        %v417 = vpack.c.b16 %v399, %v397
        %v418 = vpack.c.b16 %v402, %v400
        %v419 = vpack.c.b16 %v403, %v401
        %436 = vmatprep.subr.bf16.mxu0 %v419
        %437 = vmatpush1.bf16.msra.mxu0 %v418
        %438 = vmatprep.subr.bf16.mxu0 %v417
        %439 = vmatpush1.bf16.msra.mxu0 %v416
        %440 = vmatprep.subr.bf16.mxu0 %v415
        %441 = vmatpush1.bf16.msra.mxu0 %v414
        %442 = vmatprep.subr.bf16.mxu0 %v413
        %443 = vmatpush1.bf16.msra.mxu0 %v412
        %444 = vmatprep.subr.bf16.mxu0 %v411
        %445 = vmatpush1.bf16.msra.mxu0 %v410
        %446 = vmatprep.subr.bf16.mxu0 %v409
        %447 = vmatpush1.bf16.msra.mxu0 %v408
        %448 = vmatprep.subr.bf16.mxu0 %v407
        %449 = vmatpush1.bf16.msra.mxu0 %v406
        %450 = vmatprep.subr.bf16.mxu0 %v405
        %451 = vmatpush1.bf16.msra.mxu0 %v404
        %452 = vmatprep.subr.bf16.mxu0 0
        %453 = vmatpush2.bf16.msra.mxu0 0
        %454 = vmatprep.subr.bf16.mxu0 0
        %455 = vmatpush2.bf16.msra.mxu0 0
        %456 = vmatprep.subr.bf16.mxu0 0
        %457 = vmatpush2.bf16.msra.mxu0 0
        %458 = vmatprep.subr.bf16.mxu0 0
        %459 = vmatpush2.bf16.msra.mxu0 0
        %460 = vmatprep.subr.bf16.mxu0 0
        %461 = vmatpush2.bf16.msra.mxu0 0
        %462 = vmatprep.subr.bf16.mxu0 0
        %463 = vmatpush2.bf16.msra.mxu0 0
        %464 = vmatprep.subr.bf16.mxu0 0
        %465 = vmatpush2.bf16.msra.mxu0 0
        %466 = vmatprep.subr.bf16.mxu0 0
        %467 = vmatpush2.bf16.msra.mxu0 0
        %468 = vmatprep.mubr.bf16.mxu0 0
        %469 = vmatmul.mubr.bf16.gmra.mxu0 %v312
        %v470 = vpop.f32.mrf.mxu0
        %v471 = vadd.f32 %v349, %v470
        %v472 = vpop.f32.mrf.mxu0
        %v473 = vadd.f32 %v353, %v472
        %v474 = vpop.f32.mrf.mxu0
        %v475 = vadd.f32 %v349, %v474
        %v476 = vpop.f32.mrf.mxu0
        %v477 = vadd.f32 %v353, %v476
        %478 = vmatprep.mubr.bf16.mxu0 0
        %479 = vmatmul.mubr.bf16.gmra.mxu0 %v313
        %v480 = vpop.f32.mrf.mxu0
        %v481 = vadd.f32 %v349, %v480
        %v482 = vpop.f32.mrf.mxu0
        %v483 = vadd.f32 %v353, %v482
        %v484 = vpop.f32.mrf.mxu0
        %v485 = vadd.f32 %v349, %v484
        %v486 = vpop.f32.mrf.mxu0
        %v487 = vadd.f32 %v353, %v486
        %488 = vmatprep.mubr.bf16.mxu0 0
        %489 = vmatmul.mubr.bf16.gmra.mxu0 %v314
        %v490 = vpop.f32.mrf.mxu0
        %v491 = vadd.f32 %v349, %v490
        %v492 = vpop.f32.mrf.mxu0
        %v493 = vadd.f32 %v353, %v492
        %v494 = vpop.f32.mrf.mxu0
        %v495 = vadd.f32 %v349, %v494
        %v496 = vpop.f32.mrf.mxu0
        %v497 = vadd.f32 %v353, %v496
        %498 = vmatprep.mubr.bf16.mxu0 0
        %499 = vmatmul.mubr.bf16.gmra.mxu0 %v315
        %v500 = vpop.f32.mrf.mxu0
        %v501 = vadd.f32 %v349, %v500
        %v502 = vpop.f32.mrf.mxu0
        %v503 = vadd.f32 %v353, %v502
        %v504 = vpop.f32.mrf.mxu0
        %v505 = vadd.f32 %v349, %v504
        %v506 = vpop.f32.mrf.mxu0
        %v507 = vadd.f32 %v353, %v506
        %508 = vmatprep.mubr.bf16.mxu0 0
        %509 = vmatmul.mubr.bf16.gmra.mxu0 %v316
        %v510 = vpop.f32.mrf.mxu0
        %v511 = vadd.f32 %v349, %v510
        %v512 = vpop.f32.mrf.mxu0
        %v513 = vadd.f32 %v353, %v512
        %v514 = vpop.f32.mrf.mxu0
        %v515 = vadd.f32 %v349, %v514
        %v516 = vpop.f32.mrf.mxu0
        %v517 = vadd.f32 %v353, %v516
        %518 = vmatprep.mubr.bf16.mxu0 0
        %519 = vmatmul.mubr.bf16.gmra.mxu0 %v317
        %v520 = vpop.f32.mrf.mxu0
        %v521 = vadd.f32 %v349, %v520
        %v522 = vpop.f32.mrf.mxu0
        %v523 = vadd.f32 %v353, %v522
        %v524 = vpop.f32.mrf.mxu0
        %v525 = vadd.f32 %v349, %v524
        %v526 = vpop.f32.mrf.mxu0
        %v527 = vadd.f32 %v353, %v526
        %528 = vmatprep.mubr.bf16.mxu0 0
        %529 = vmatmul.mubr.bf16.gmra.mxu0 %v318
        %v530 = vpop.f32.mrf.mxu0
        %v531 = vadd.f32 %v349, %v530
        %v532 = vpop.f32.mrf.mxu0
        %v533 = vadd.f32 %v353, %v532
        %v534 = vpop.f32.mrf.mxu0
        %v535 = vadd.f32 %v349, %v534
        %v536 = vpop.f32.mrf.mxu0
        %v537 = vadd.f32 %v353, %v536
        %538 = vmatprep.mubr.bf16.mxu0 0
        %539 = vmatmul.mubr.bf16.gmra.mxu0 %v319
        %v540 = vpop.f32.mrf.mxu0
        %v541 = vadd.f32 %v349, %v540
        %v542 = vpop.f32.mrf.mxu0
        %v543 = vadd.f32 %v353, %v542
        %v544 = vpop.f32.mrf.mxu0
        %v545 = vadd.f32 %v349, %v544
        %v546 = vpop.f32.mrf.mxu0
        %v547 = vadd.f32 %v353, %v546
        %548 = vmatprep.mubr.bf16.mxu0 0
        %549 = vmatmul.mubr.bf16.gmra.mxu0 %v320
        %v550 = vpop.f32.mrf.mxu0
        %v551 = vadd.f32 %v349, %v550
        %v552 = vpop.f32.mrf.mxu0
        %v553 = vadd.f32 %v353, %v552
        %v554 = vpop.f32.mrf.mxu0
        %v555 = vadd.f32 %v349, %v554
        %v556 = vpop.f32.mrf.mxu0
        %v557 = vadd.f32 %v353, %v556
        %558 = vmatprep.mubr.bf16.mxu0 0
        %559 = vmatmul.mubr.bf16.gmra.mxu0 %v321
        %v560 = vpop.f32.mrf.mxu0
        %v561 = vadd.f32 %v349, %v560
        %v562 = vpop.f32.mrf.mxu0
        %v563 = vadd.f32 %v353, %v562
        %v564 = vpop.f32.mrf.mxu0
        %v565 = vadd.f32 %v349, %v564
        %v566 = vpop.f32.mrf.mxu0
        %v567 = vadd.f32 %v353, %v566
        %568 = vmatprep.mubr.bf16.mxu0 0
        %569 = vmatmul.mubr.bf16.gmra.mxu0 %v322
        %v570 = vpop.f32.mrf.mxu0
        %v571 = vadd.f32 %v349, %v570
        %v572 = vpop.f32.mrf.mxu0
        %v573 = vadd.f32 %v353, %v572
        %v574 = vpop.f32.mrf.mxu0
        %v575 = vadd.f32 %v349, %v574
        %v576 = vpop.f32.mrf.mxu0
        %v577 = vadd.f32 %v353, %v576
        %578 = vmatprep.mubr.bf16.mxu0 0
        %579 = vmatmul.mubr.bf16.gmra.mxu0 %v323
        %v580 = vpop.f32.mrf.mxu0
        %v581 = vadd.f32 %v349, %v580
        %v582 = vpop.f32.mrf.mxu0
        %v583 = vadd.f32 %v353, %v582
        %v584 = vpop.f32.mrf.mxu0
        %v585 = vadd.f32 %v349, %v584
        %v586 = vpop.f32.mrf.mxu0
        %v587 = vadd.f32 %v353, %v586
        %588 = vmatprep.mubr.bf16.mxu0 0
        %589 = vmatmul.mubr.bf16.gmra.mxu0 %v324
        %v590 = vpop.f32.mrf.mxu0
        %v591 = vadd.f32 %v349, %v590
        %v592 = vpop.f32.mrf.mxu0
        %v593 = vadd.f32 %v353, %v592
        %v594 = vpop.f32.mrf.mxu0
        %v595 = vadd.f32 %v349, %v594
        %v596 = vpop.f32.mrf.mxu0
        %v597 = vadd.f32 %v353, %v596
        %598 = vmatprep.mubr.bf16.mxu0 0
        %599 = vmatmul.mubr.bf16.gmra.mxu0 %v325
        %v600 = vpop.f32.mrf.mxu0
        %v601 = vadd.f32 %v349, %v600
        %v602 = vpop.f32.mrf.mxu0
        %v603 = vadd.f32 %v353, %v602
        %v604 = vpop.f32.mrf.mxu0
        %v605 = vadd.f32 %v349, %v604
        %v606 = vpop.f32.mrf.mxu0
        %v607 = vadd.f32 %v353, %v606
        %608 = vmatprep.mubr.bf16.mxu0 0
        %609 = vmatmul.mubr.bf16.gmra.mxu0 %v326
        %v610 = vpop.f32.mrf.mxu0
        %v611 = vadd.f32 %v349, %v610
        %v612 = vpop.f32.mrf.mxu0
        %v613 = vadd.f32 %v353, %v612
        %v614 = vpop.f32.mrf.mxu0
        %v615 = vadd.f32 %v349, %v614
        %v616 = vpop.f32.mrf.mxu0
        %v617 = vadd.f32 %v353, %v616
        %618 = vmatprep.mubr.bf16.mxu0 0
        %619 = vmatmul.mubr.bf16.gmra.mxu0 %v327
        %v620 = vpop.f32.mrf.mxu0
        %v621 = vadd.f32 %v349, %v620
        %v622 = vpop.f32.mrf.mxu0
        %v623 = vadd.f32 %v353, %v622
        %v624 = vpop.f32.mrf.mxu0
        %v625 = vadd.f32 %v349, %v624
        %v626 = vpop.f32.mrf.mxu0
        %v627 = vadd.f32 %v353, %v626
        %628 = vdwg.mxu0
        %v629 = vmul.f32 %v471, %v471
        %v630 = vmul.f32 %v475, %v475
        %v631 = vmul.f32 %v481, %v481
        %v632 = vmul.f32 %v485, %v485
        %v633 = vmul.f32 %v491, %v491
        %v634 = vmul.f32 %v495, %v495
        %v635 = vmul.f32 %v501, %v501
        %v636 = vmul.f32 %v505, %v505
        %v637 = vmul.f32 %v511, %v511
        %v638 = vmul.f32 %v515, %v515
        %v639 = vmul.f32 %v521, %v521
        %v640 = vmul.f32 %v525, %v525
        %v641 = vmul.f32 %v531, %v531
        %v642 = vmul.f32 %v535, %v535
        %v643 = vmul.f32 %v541, %v541
        %v644 = vmul.f32 %v545, %v545
        %v645 = vmul.f32 %v551, %v551
        %v646 = vmul.f32 %v555, %v555
        %v647 = vmul.f32 %v561, %v561
        %v648 = vmul.f32 %v565, %v565
        %v649 = vmul.f32 %v571, %v571
        %v650 = vmul.f32 %v575, %v575
        %v651 = vmul.f32 %v581, %v581
        %v652 = vmul.f32 %v585, %v585
        %v653 = vmul.f32 %v591, %v591
        %v654 = vmul.f32 %v595, %v595
        %v655 = vmul.f32 %v601, %v601
        %v656 = vmul.f32 %v605, %v605
        %v657 = vmul.f32 %v611, %v611
        %v658 = vmul.f32 %v615, %v615
        %v659 = vmul.f32 %v621, %v621
        %v660 = vmul.f32 %v625, %v625
        %661 = vadd.xlane.f32.xlu0 %v629
        %v662 = vpop.xlane.xlu0 %661
        %663 = vadd.xlane.f32.xlu0 %v630
        %v664 = vpop.xlane.xlu0 %663
        %665 = vadd.xlane.f32.xlu0 %v631
        %v666 = vpop.xlane.xlu0 %665
        %667 = vadd.xlane.f32.xlu0 %v632
        %v668 = vpop.xlane.xlu0 %667
        %669 = vadd.xlane.f32.xlu0 %v633
        %v670 = vpop.xlane.xlu0 %669
        %671 = vadd.xlane.f32.xlu0 %v634
        %v672 = vpop.xlane.xlu0 %671
        %673 = vadd.xlane.f32.xlu0 %v635
        %v674 = vpop.xlane.xlu0 %673
        %675 = vadd.xlane.f32.xlu0 %v636
        %v676 = vpop.xlane.xlu0 %675
        %677 = vadd.xlane.f32.xlu0 %v637
        %v678 = vpop.xlane.xlu0 %677
        %679 = vadd.xlane.f32.xlu0 %v638
        %v680 = vpop.xlane.xlu0 %679
        %681 = vadd.xlane.f32.xlu0 %v639
        %v682 = vpop.xlane.xlu0 %681
        %683 = vadd.xlane.f32.xlu0 %v640
        %v684 = vpop.xlane.xlu0 %683
        %685 = vadd.xlane.f32.xlu0 %v641
        %v686 = vpop.xlane.xlu0 %685
        %687 = vadd.xlane.f32.xlu0 %v642
        %v688 = vpop.xlane.xlu0 %687
        %689 = vadd.xlane.f32.xlu0 %v643
        %v690 = vpop.xlane.xlu0 %689
        %691 = vadd.xlane.f32.xlu0 %v644
        %v692 = vpop.xlane.xlu0 %691
        %693 = vadd.xlane.f32.xlu0 %v645
        %v694 = vpop.xlane.xlu0 %693
        %695 = vadd.xlane.f32.xlu0 %v646
        %v696 = vpop.xlane.xlu0 %695
        %697 = vadd.xlane.f32.xlu0 %v647
        %v698 = vpop.xlane.xlu0 %697
        %699 = vadd.xlane.f32.xlu0 %v648
        %v700 = vpop.xlane.xlu0 %699
        %701 = vadd.xlane.f32.xlu0 %v649
        %v702 = vpop.xlane.xlu0 %701
        %703 = vadd.xlane.f32.xlu0 %v650
        %v704 = vpop.xlane.xlu0 %703
        %705 = vadd.xlane.f32.xlu0 %v651
        %v706 = vpop.xlane.xlu0 %705
        %707 = vadd.xlane.f32.xlu0 %v652
        %v708 = vpop.xlane.xlu0 %707
        %709 = vadd.xlane.f32.xlu0 %v653
        %v710 = vpop.xlane.xlu0 %709
        %711 = vadd.xlane.f32.xlu0 %v654
        %v712 = vpop.xlane.xlu0 %711
        %713 = vadd.xlane.f32.xlu0 %v655
        %v714 = vpop.xlane.xlu0 %713
        %715 = vadd.xlane.f32.xlu0 %v656
        %v716 = vpop.xlane.xlu0 %715
        %717 = vadd.xlane.f32.xlu0 %v657
        %v718 = vpop.xlane.xlu0 %717
        %719 = vadd.xlane.f32.xlu0 %v658
        %v720 = vpop.xlane.xlu0 %719
        %721 = vadd.xlane.f32.xlu0 %v659
        %v722 = vpop.xlane.xlu0 %721
        %723 = vadd.xlane.f32.xlu0 %v660
        %v724 = vpop.xlane.xlu0 %723
        %v725 = vadd.f32 %v662, 1e-07
        %v726 = vadd.f32 %v664, 1e-07
        %v727 = vadd.f32 %v666, 1e-07
        %v728 = vadd.f32 %v668, 1e-07
        %v729 = vadd.f32 %v670, 1e-07
        %v730 = vadd.f32 %v672, 1e-07
        %v731 = vadd.f32 %v674, 1e-07
        %v732 = vadd.f32 %v676, 1e-07
        %v733 = vadd.f32 %v678, 1e-07
        %v734 = vadd.f32 %v680, 1e-07
        %v735 = vadd.f32 %v682, 1e-07
        %v736 = vadd.f32 %v684, 1e-07
        %v737 = vadd.f32 %v686, 1e-07
        %v738 = vadd.f32 %v688, 1e-07
        %v739 = vadd.f32 %v690, 1e-07
        %v740 = vadd.f32 %v692, 1e-07
        %v741 = vadd.f32 %v694, 1e-07
        %v742 = vadd.f32 %v696, 1e-07
        %v743 = vadd.f32 %v698, 1e-07
        %v744 = vadd.f32 %v700, 1e-07
        %v745 = vadd.f32 %v702, 1e-07
        %v746 = vadd.f32 %v704, 1e-07
        %v747 = vadd.f32 %v706, 1e-07
        %v748 = vadd.f32 %v708, 1e-07
        %v749 = vadd.f32 %v710, 1e-07
        %v750 = vadd.f32 %v712, 1e-07
        %v751 = vadd.f32 %v714, 1e-07
        %v752 = vadd.f32 %v716, 1e-07
        %v753 = vadd.f32 %v718, 1e-07
        %v754 = vadd.f32 %v720, 1e-07
        %v755 = vadd.f32 %v722, 1e-07
        %v756 = vadd.f32 %v724, 1e-07
        %v757 = vrcp.pop %v725
        %v758 = vrcp.pop %v726
        %v759 = vrcp.pop %v727
        %v760 = vrcp.pop %v728
        %v761 = vrcp.pop %v729
        %v762 = vrcp.pop %v730
        %v763 = vrcp.pop %v731
        %v764 = vrcp.pop %v732
        %v765 = vrcp.pop %v733
        %v766 = vrcp.pop %v734
        %v767 = vrcp.pop %v735
        %v768 = vrcp.pop %v736
        %v769 = vrcp.pop %v737
        %v770 = vrcp.pop %v738
        %v771 = vrcp.pop %v739
        %v772 = vrcp.pop %v740
        %v773 = vrcp.pop %v741
        %v774 = vrcp.pop %v742
        %v775 = vrcp.pop %v743
        %v776 = vrcp.pop %v744
        %v777 = vrcp.pop %v745
        %v778 = vrcp.pop %v746
        %v779 = vrcp.pop %v747
        %v780 = vrcp.pop %v748
        %v781 = vrcp.pop %v749
        %v782 = vrcp.pop %v750
        %v783 = vrcp.pop %v751
        %v784 = vrcp.pop %v752
        %v785 = vrcp.pop %v753
        %v786 = vrcp.pop %v754
        %v787 = vrcp.pop %v755
        %v788 = vrcp.pop %v756
        %v789 = vmul.f32 %v629, %v757
        %v790 = vmul.f32 %v630, %v758
        %v791 = vmul.f32 %v631, %v759
        %v792 = vmul.f32 %v632, %v760
        %v793 = vmul.f32 %v633, %v761
        %v794 = vmul.f32 %v634, %v762
        %v795 = vmul.f32 %v635, %v763
        %v796 = vmul.f32 %v636, %v764
        %v797 = vmul.f32 %v637, %v765
        %v798 = vmul.f32 %v638, %v766
        %v799 = vmul.f32 %v639, %v767
        %v800 = vmul.f32 %v640, %v768
        %v801 = vmul.f32 %v641, %v769
        %v802 = vmul.f32 %v642, %v770
        %v803 = vmul.f32 %v643, %v771
        %v804 = vmul.f32 %v644, %v772
        %v805 = vmul.f32 %v645, %v773
        %v806 = vmul.f32 %v646, %v774
        %v807 = vmul.f32 %v647, %v775
        %v808 = vmul.f32 %v648, %v776
        %v809 = vmul.f32 %v649, %v777
        %v810 = vmul.f32 %v650, %v778
        %v811 = vmul.f32 %v651, %v779
        %v812 = vmul.f32 %v652, %v780
        %v813 = vmul.f32 %v653, %v781
        %v814 = vmul.f32 %v654, %v782
        %v815 = vmul.f32 %v655, %v783
        %v816 = vmul.f32 %v656, %v784
        %v817 = vmul.f32 %v657, %v785
        %v818 = vmul.f32 %v658, %v786
        %v819 = vmul.f32 %v659, %v787
        %v820 = vmul.f32 %v660, %v788
        %v821 = vld [vmem:[%s250] sm:$0xff]
        %v822 = vld [vmem:[%s250 + $0x8] sm:$0xff]
        %v823 = vld [vmem:[%s250 + $0x10] sm:$0xff]
        %v824 = vld [vmem:[%s250 + $0x18] sm:$0xff]
        %v825 = vld [vmem:[%s250 + $0x20] sm:$0xff]
        %v826 = vld [vmem:[%s250 + $0x28] sm:$0xff]
        %v827 = vld [vmem:[%s250 + $0x30] sm:$0xff]
        %v828 = vld [vmem:[%s250 + $0x38] sm:$0xff]
        %v829 = vld [vmem:[%s250 + $0x40] sm:$0xff]
        %v830 = vld [vmem:[%s250 + $0x48] sm:$0xff]
        %v831 = vld [vmem:[%s250 + $0x50] sm:$0xff]
        %v832 = vld [vmem:[%s250 + $0x58] sm:$0xff]
        %v833 = vld [vmem:[%s250 + $0x60] sm:$0xff]
        %v834 = vld [vmem:[%s250 + $0x68] sm:$0xff]
        %v835 = vld [vmem:[%s250 + $0x70] sm:$0xff]
        %v836 = vld [vmem:[%s250 + $0x78] sm:$0xff]
        %v837 = vpack.c.bf16 %v790, %v789
        %v838 = vpack.c.bf16 %v792, %v791
        %v839 = vpack.c.bf16 %v794, %v793
        %v840 = vpack.c.bf16 %v796, %v795
        %v841 = vpack.c.bf16 %v798, %v797
        %v842 = vpack.c.bf16 %v800, %v799
        %v843 = vpack.c.bf16 %v802, %v801
        %v844 = vpack.c.bf16 %v804, %v803
        %v845 = vpack.c.bf16 %v806, %v805
        %v846 = vpack.c.bf16 %v808, %v807
        %v847 = vpack.c.bf16 %v810, %v809
        %v848 = vpack.c.bf16 %v812, %v811
        %v849 = vpack.c.bf16 %v814, %v813
        %v850 = vpack.c.bf16 %v816, %v815
        %v851 = vpack.c.bf16 %v818, %v817
        %v852 = vpack.c.bf16 %v820, %v819
        %v853 = vpack.c.bf16 %v477, %v473
        %v854 = vpack.c.bf16 %v487, %v483
        %v855 = vpack.c.bf16 %v497, %v493
        %v856 = vpack.c.bf16 %v507, %v503
        %v857 = vpack.c.bf16 %v517, %v513
        %v858 = vpack.c.bf16 %v527, %v523
        %v859 = vpack.c.bf16 %v537, %v533
        %v860 = vpack.c.bf16 %v547, %v543
        %v861 = vpack.c.bf16 %v557, %v553
        %v862 = vpack.c.bf16 %v567, %v563
        %v863 = vpack.c.bf16 %v577, %v573
        %v864 = vpack.c.bf16 %v587, %v583
        %v865 = vpack.c.bf16 %v597, %v593
        %v866 = vpack.c.bf16 %v607, %v603
        %v867 = vpack.c.bf16 %v617, %v613
        %v868 = vpack.c.bf16 %v627, %v623
        %869 = vxpose.xlu0.c.b16.start [1/8] %v837, 128
        %870 = vxpose.xlu0.c.b16.cont [2/8] %v838, 128
        %871 = vxpose.xlu0.c.b16.cont [3/8] %v839, 128
        %872 = vxpose.xlu0.c.b16.cont [4/8] %v840, 128
        %873 = vxpose.xlu0.c.b16.cont [5/8] %v841, 128
        %874 = vxpose.xlu0.c.b16.cont [6/8] %v842, 128
        %875 = vxpose.xlu0.c.b16.cont [7/8] %v843, 128
        %876 = vxpose.xlu0.c.b16.end [8/8] %v844, 128
        %v877 = vpop.trf.xlu0
        %v878 = vpop.trf.xlu0
        %v879 = vpop.trf.xlu0
        %v880 = vpop.trf.xlu0
        %v881 = vpop.trf.xlu0
        %v882 = vpop.trf.xlu0
        %v883 = vpop.trf.xlu0
        %v884 = vpop.trf.xlu0
        %885 = vxpose.xlu0.c.b16.start [1/8] %v845, 128
        %886 = vxpose.xlu0.c.b16.cont [2/8] %v846, 128
        %887 = vxpose.xlu0.c.b16.cont [3/8] %v847, 128
        %888 = vxpose.xlu0.c.b16.cont [4/8] %v848, 128
        %889 = vxpose.xlu0.c.b16.cont [5/8] %v849, 128
        %890 = vxpose.xlu0.c.b16.cont [6/8] %v850, 128
        %891 = vxpose.xlu0.c.b16.cont [7/8] %v851, 128
        %892 = vxpose.xlu0.c.b16.end [8/8] %v852, 128
        %v893 = vpop.trf.xlu0
        %v894 = vpop.trf.xlu0
        %v895 = vpop.trf.xlu0
        %v896 = vpop.trf.xlu0
        %v897 = vpop.trf.xlu0
        %v898 = vpop.trf.xlu0
        %v899 = vpop.trf.xlu0
        %v900 = vpop.trf.xlu0
        %901 = vmatprep.subr.bf16.mxu0 0
        %902 = vmatpush1.bf16.msra.mxu0 %v860
        %903 = vmatprep.subr.bf16.mxu0 0
        %904 = vmatpush1.bf16.msra.mxu0 %v859
        %905 = vmatprep.subr.bf16.mxu0 0
        %906 = vmatpush1.bf16.msra.mxu0 %v858
        %907 = vmatprep.subr.bf16.mxu0 0
        %908 = vmatpush1.bf16.msra.mxu0 %v857
        %909 = vmatprep.subr.bf16.mxu0 0
        %910 = vmatpush1.bf16.msra.mxu0 %v856
        %911 = vmatprep.subr.bf16.mxu0 0
        %912 = vmatpush1.bf16.msra.mxu0 %v855
        %913 = vmatprep.subr.bf16.mxu0 0
        %914 = vmatpush1.bf16.msra.mxu0 %v854
        %915 = vmatprep.subr.bf16.mxu0 0
        %916 = vmatpush1.bf16.msra.mxu0 %v853
        %917 = vmatprep.subr.bf16.mxu0 0
        %918 = vmatpush2.bf16.msra.mxu0 %v868
        %919 = vmatprep.subr.bf16.mxu0 0
        %920 = vmatpush2.bf16.msra.mxu0 %v867
        %921 = vmatprep.subr.bf16.mxu0 0
        %922 = vmatpush2.bf16.msra.mxu0 %v866
        %923 = vmatprep.subr.bf16.mxu0 0
        %924 = vmatpush2.bf16.msra.mxu0 %v865
        %925 = vmatprep.subr.bf16.mxu0 0
        %926 = vmatpush2.bf16.msra.mxu0 %v864
        %927 = vmatprep.subr.bf16.mxu0 0
        %928 = vmatpush2.bf16.msra.mxu0 %v863
        %929 = vmatprep.subr.bf16.mxu0 0
        %930 = vmatpush2.bf16.msra.mxu0 %v862
        %931 = vmatprep.subr.bf16.mxu0 0
        %932 = vmatpush2.bf16.msra.mxu0 %v861
        %933 = vmatprep.mubr.bf16.mxu0 %v893
        %934 = vmatmul.mubr.bf16.gmra.mxu0 %v877
        %v935 = vpop.f32.mrf.mxu0
        %v936 = vadd.f32 0.0, %v935
        %v937 = vpop.f32.mrf.mxu0
        %v938 = vpop.f32.mrf.mxu0
        %v939 = vadd.f32 0.0, %v938
        %v940 = vpop.f32.mrf.mxu0
        %941 = vmatprep.mubr.bf16.mxu0 %v894
        %942 = vmatmul.mubr.bf16.gmra.mxu0 %v878
        %v943 = vpop.f32.mrf.mxu0
        %v944 = vadd.f32 0.0, %v943
        %v945 = vpop.f32.mrf.mxu0
        %v946 = vpop.f32.mrf.mxu0
        %v947 = vadd.f32 0.0, %v946
        %v948 = vpop.f32.mrf.mxu0
        %949 = vmatprep.mubr.bf16.mxu0 %v895
        %950 = vmatmul.mubr.bf16.gmra.mxu0 %v879
        %v951 = vpop.f32.mrf.mxu0
        %v952 = vadd.f32 0.0, %v951
        %v953 = vpop.f32.mrf.mxu0
        %v954 = vpop.f32.mrf.mxu0
        %v955 = vadd.f32 0.0, %v954
        %v956 = vpop.f32.mrf.mxu0
        %957 = vmatprep.mubr.bf16.mxu0 %v896
        %958 = vmatmul.mubr.bf16.gmra.mxu0 %v880
        %v959 = vpop.f32.mrf.mxu0
        %v960 = vadd.f32 0.0, %v959
        %v961 = vpop.f32.mrf.mxu0
        %v962 = vpop.f32.mrf.mxu0
        %v963 = vadd.f32 0.0, %v962
        %v964 = vpop.f32.mrf.mxu0
        %965 = vmatprep.mubr.bf16.mxu0 %v897
        %966 = vmatmul.mubr.bf16.gmra.mxu0 %v881
        %v967 = vpop.f32.mrf.mxu0
        %v968 = vadd.f32 0.0, %v967
        %v969 = vpop.f32.mrf.mxu0
        %v970 = vpop.f32.mrf.mxu0
        %v971 = vadd.f32 0.0, %v970
        %v972 = vpop.f32.mrf.mxu0
        %973 = vmatprep.mubr.bf16.mxu0 %v898
        %974 = vmatmul.mubr.bf16.gmra.mxu0 %v882
        %v975 = vpop.f32.mrf.mxu0
        %v976 = vadd.f32 0.0, %v975
        %v977 = vpop.f32.mrf.mxu0
        %v978 = vpop.f32.mrf.mxu0
        %v979 = vadd.f32 0.0, %v978
        %v980 = vpop.f32.mrf.mxu0
        %981 = vmatprep.mubr.bf16.mxu0 %v899
        %982 = vmatmul.mubr.bf16.gmra.mxu0 %v883
        %v983 = vpop.f32.mrf.mxu0
        %v984 = vadd.f32 0.0, %v983
        %v985 = vpop.f32.mrf.mxu0
        %v986 = vpop.f32.mrf.mxu0
        %v987 = vadd.f32 0.0, %v986
        %v988 = vpop.f32.mrf.mxu0
        %989 = vmatprep.mubr.bf16.mxu0 %v900
        %990 = vmatmul.mubr.bf16.gmra.mxu0 %v884
        %v991 = vpop.f32.mrf.mxu0
        %v992 = vadd.f32 0.0, %v991
        %v993 = vpop.f32.mrf.mxu0
        %v994 = vpop.f32.mrf.mxu0
        %v995 = vadd.f32 0.0, %v994
        %v996 = vpop.f32.mrf.mxu0
        %997 = vdwg.mxu0
        %v998 = vadd.f32 %v821, %v936
        %v999 = vadd.f32 %v822, %v939
        %v1000 = vadd.f32 %v823, %v944
        %v1001 = vadd.f32 %v824, %v947
        %v1002 = vadd.f32 %v825, %v952
        %v1003 = vadd.f32 %v826, %v955
        %v1004 = vadd.f32 %v827, %v960
        %v1005 = vadd.f32 %v828, %v963
        %v1006 = vadd.f32 %v829, %v968
        %v1007 = vadd.f32 %v830, %v971
        %v1008 = vadd.f32 %v831, %v976
        %v1009 = vadd.f32 %v832, %v979
        %v1010 = vadd.f32 %v833, %v984
        %v1011 = vadd.f32 %v834, %v987
        %v1012 = vadd.f32 %v835, %v992
        %v1013 = vadd.f32 %v836, %v995
        %1014 = vst [vmem:[%s250] sm:$0xff] %v998
        %1015 = vst [vmem:[%s250 + $0x8] sm:$0xff] %v999
        %1016 = vst [vmem:[%s250 + $0x10] sm:$0xff] %v1000
        %1017 = vst [vmem:[%s250 + $0x18] sm:$0xff] %v1001
        %1018 = vst [vmem:[%s250 + $0x20] sm:$0xff] %v1002
        %1019 = vst [vmem:[%s250 + $0x28] sm:$0xff] %v1003
        %1020 = vst [vmem:[%s250 + $0x30] sm:$0xff] %v1004
        %1021 = vst [vmem:[%s250 + $0x38] sm:$0xff] %v1005
        %1022 = vst [vmem:[%s250 + $0x40] sm:$0xff] %v1006
        %1023 = vst [vmem:[%s250 + $0x48] sm:$0xff] %v1007
        %1024 = vst [vmem:[%s250 + $0x50] sm:$0xff] %v1008
        %1025 = vst [vmem:[%s250 + $0x58] sm:$0xff] %v1009
        %1026 = vst [vmem:[%s250 + $0x60] sm:$0xff] %v1010
        %1027 = vst [vmem:[%s250 + $0x68] sm:$0xff] %v1011
        %1028 = vst [vmem:[%s250 + $0x70] sm:$0xff] %v1012
        %1029 = vst [vmem:[%s250 + $0x78] sm:$0xff] %v1013
        %v1030 = vld [vmem:[%s256] sm:$0x1]
        %v1031 = vmul.f32 %v789, %v789
        %v1032 = vmul.f32 %v790, %v790
        %v1033 = vmul.f32 %v791, %v791
        %v1034 = vmul.f32 %v792, %v792
        %v1035 = vmul.f32 %v793, %v793
        %v1036 = vmul.f32 %v794, %v794
        %v1037 = vmul.f32 %v795, %v795
        %v1038 = vmul.f32 %v796, %v796
        %v1039 = vmul.f32 %v797, %v797
        %v1040 = vmul.f32 %v798, %v798
        %v1041 = vmul.f32 %v799, %v799
        %v1042 = vmul.f32 %v800, %v800
        %v1043 = vmul.f32 %v801, %v801
        %v1044 = vmul.f32 %v802, %v802
        %v1045 = vmul.f32 %v803, %v803
        %v1046 = vmul.f32 %v804, %v804
        %v1047 = vmul.f32 %v805, %v805
        %v1048 = vmul.f32 %v806, %v806
        %v1049 = vmul.f32 %v807, %v807
        %v1050 = vmul.f32 %v808, %v808
        %v1051 = vmul.f32 %v809, %v809
        %v1052 = vmul.f32 %v810, %v810
        %v1053 = vmul.f32 %v811, %v811
        %v1054 = vmul.f32 %v812, %v812
        %v1055 = vmul.f32 %v813, %v813
        %v1056 = vmul.f32 %v814, %v814
        %v1057 = vmul.f32 %v815, %v815
        %v1058 = vmul.f32 %v816, %v816
        %v1059 = vmul.f32 %v817, %v817
        %v1060 = vmul.f32 %v818, %v818
        %v1061 = vmul.f32 %v819, %v819
        %v1062 = vmul.f32 %v820, %v820
        %v1063 = vadd.f32 %v1031, %v1032
        %v1064 = vadd.f32 %v1063, %v1033
        %v1065 = vadd.f32 %v1064, %v1034
        %v1066 = vadd.f32 %v1065, %v1035
        %v1067 = vadd.f32 %v1066, %v1036
        %v1068 = vadd.f32 %v1067, %v1037
        %v1069 = vadd.f32 %v1068, %v1038
        %v1070 = vadd.f32 %v1069, %v1039
        %v1071 = vadd.f32 %v1070, %v1040
        %v1072 = vadd.f32 %v1071, %v1041
        %v1073 = vadd.f32 %v1072, %v1042
        %v1074 = vadd.f32 %v1073, %v1043
        %v1075 = vadd.f32 %v1074, %v1044
        %v1076 = vadd.f32 %v1075, %v1045
        %v1077 = vadd.f32 %v1076, %v1046
        %v1078 = vadd.f32 %v1077, %v1047
        %v1079 = vadd.f32 %v1078, %v1048
        %v1080 = vadd.f32 %v1079, %v1049
        %v1081 = vadd.f32 %v1080, %v1050
        %v1082 = vadd.f32 %v1081, %v1051
        %v1083 = vadd.f32 %v1082, %v1052
        %v1084 = vadd.f32 %v1083, %v1053
        %v1085 = vadd.f32 %v1084, %v1054
        %v1086 = vadd.f32 %v1085, %v1055
        %v1087 = vadd.f32 %v1086, %v1056
        %v1088 = vadd.f32 %v1087, %v1057
        %v1089 = vadd.f32 %v1088, %v1058
        %v1090 = vadd.f32 %v1089, %v1059
        %v1091 = vadd.f32 %v1090, %v1060
        %v1092 = vadd.f32 %v1091, %v1061
        %v1093 = vadd.f32 %v1092, %v1062
        %v1094 = vrot.slane %v1093, 4
        %v1095 = vadd.f32 %v1093, %v1094
        %v1096 = vrot.slane %v1095, 2
        %v1097 = vadd.f32 %v1095, %v1096
        %v1098 = vrot.slane %v1097, 1
        %v1099 = vadd.f32 %v1097, %v1098
        %v1100 = vadd.f32 %v1030, %v1099
        %1101 = vst [vmem:[%s256] sm:$0x1] %v1100
        %s1102 = scalar_lea.vmem %s224, 256 [#allocation2]
        %v1103 = vld [vmem:[%s1102] sm:$0xff]
        %v1104 = vld [vmem:[%s1102 + $0x8] sm:$0xff]
        %v1105 = vld [vmem:[%s1102 + $0x10] sm:$0xff]
        %v1106 = vld [vmem:[%s1102 + $0x18] sm:$0xff]
        %v1107 = vld [vmem:[%s1102 + $0x20] sm:$0xff]
        %v1108 = vld [vmem:[%s1102 + $0x28] sm:$0xff]
        %v1109 = vld [vmem:[%s1102 + $0x30] sm:$0xff]
        %v1110 = vld [vmem:[%s1102 + $0x38] sm:$0xff]
        %v1111 = vld [vmem:[%s1102 + $0x40] sm:$0xff]
        %v1112 = vld [vmem:[%s1102 + $0x48] sm:$0xff]
        %v1113 = vld [vmem:[%s1102 + $0x50] sm:$0xff]
        %v1114 = vld [vmem:[%s1102 + $0x58] sm:$0xff]
        %v1115 = vld [vmem:[%s1102 + $0x60] sm:$0xff]
        %v1116 = vld [vmem:[%s1102 + $0x68] sm:$0xff]
        %v1117 = vld [vmem:[%s1102 + $0x70] sm:$0xff]
        %v1118 = vld [vmem:[%s1102 + $0x78] sm:$0xff]
        %v1119 = vld [vmem:[%s1102 + $0x80] sm:$0xff]
        %v1120 = vld [vmem:[%s1102 + $0x88] sm:$0xff]
        %v1121 = vld [vmem:[%s1102 + $0x90] sm:$0xff]
        %v1122 = vld [vmem:[%s1102 + $0x98] sm:$0xff]
        %v1123 = vld [vmem:[%s1102 + $0xa0] sm:$0xff]
        %v1124 = vld [vmem:[%s1102 + $0xa8] sm:$0xff]
        %v1125 = vld [vmem:[%s1102 + $0xb0] sm:$0xff]
        %v1126 = vld [vmem:[%s1102 + $0xb8] sm:$0xff]
        %v1127 = vld [vmem:[%s1102 + $0xc0] sm:$0xff]
        %v1128 = vld [vmem:[%s1102 + $0xc8] sm:$0xff]
        %v1129 = vld [vmem:[%s1102 + $0xd0] sm:$0xff]
        %v1130 = vld [vmem:[%s1102 + $0xd8] sm:$0xff]
        %v1131 = vld [vmem:[%s1102 + $0xe0] sm:$0xff]
        %v1132 = vld [vmem:[%s1102 + $0xe8] sm:$0xff]
        %v1133 = vld [vmem:[%s1102 + $0xf0] sm:$0xff]
        %v1134 = vld [vmem:[%s1102 + $0xf8] sm:$0xff]
        %v1135 = vpack.c.bf16 %v1104, %v1103
        %v1136 = vpack.c.bf16 %v1106, %v1105
        %v1137 = vpack.c.bf16 %v1108, %v1107
        %v1138 = vpack.c.bf16 %v1110, %v1109
        %v1139 = vpack.c.bf16 %v1112, %v1111
        %v1140 = vpack.c.bf16 %v1114, %v1113
        %v1141 = vpack.c.bf16 %v1116, %v1115
        %v1142 = vpack.c.bf16 %v1118, %v1117
        %v1143 = vpack.c.bf16 %v1120, %v1119
        %v1144 = vpack.c.bf16 %v1122, %v1121
        %v1145 = vpack.c.bf16 %v1124, %v1123
        %v1146 = vpack.c.bf16 %v1126, %v1125
        %v1147 = vpack.c.bf16 %v1128, %v1127
        %v1148 = vpack.c.bf16 %v1130, %v1129
        %v1149 = vpack.c.bf16 %v1132, %v1131
        %v1150 = vpack.c.bf16 %v1134, %v1133
        %v1151 = vld [vmem:[#allocation5] sm:$0xff]
        %v1152 = vld [vmem:[#allocation5 + $0x8] sm:$0xff]
        %v1153 = vld [vmem:[#allocation5 + $0x10] sm:$0xff]
        %v1154 = vld [vmem:[#allocation5 + $0x18] sm:$0xff]
        %v1155 = vld [vmem:[#allocation5 + $0x20] sm:$0xff]
        %v1156 = vld [vmem:[#allocation5 + $0x28] sm:$0xff]
        %v1157 = vld [vmem:[#allocation5 + $0x30] sm:$0xff]
        %v1158 = vld [vmem:[#allocation5 + $0x38] sm:$0xff]
        %v1159 = vld [vmem:[#allocation5 + $0x40] sm:$0xff]
        %v1160 = vld [vmem:[#allocation5 + $0x48] sm:$0xff]
        %v1161 = vld [vmem:[#allocation5 + $0x50] sm:$0xff]
        %v1162 = vld [vmem:[#allocation5 + $0x58] sm:$0xff]
        %v1163 = vld [vmem:[#allocation5 + $0x60] sm:$0xff]
        %v1164 = vld [vmem:[#allocation5 + $0x68] sm:$0xff]
        %v1165 = vld [vmem:[#allocation5 + $0x70] sm:$0xff]
        %v1166 = vld [vmem:[#allocation5 + $0x78] sm:$0xff]
        %v1167 = vld [vmem:[%s2] sm:$0x3]
        %v1169 = vlaneseq
        %v1170 = vshrl.u32 %v1169, 7
        %v1171 = vsub.s32 0, %v1170
        %v1172 = vrot.slane %v1167, %v1171
        %v1173 = vlaneseq
        %v1174 = vshrl.u32 %v1173, 7
        %v1175 = vsub.s32 1, %v1174
        %v1176 = vrot.slane %v1167, %v1175
        %v1195 = vunpack.c.l.b16 %v1151
        %v1196 = vunpack.c.h.b16 %v1151
        %v1197 = vunpack.c.l.b16 %v1152
        %v1198 = vunpack.c.h.b16 %v1152
        %v1199 = vunpack.c.l.b16 %v1153
        %v1200 = vunpack.c.h.b16 %v1153
        %v1201 = vunpack.c.l.b16 %v1154
        %v1202 = vunpack.c.h.b16 %v1154
        %v1203 = vunpack.c.l.b16 %v1155
        %v1204 = vunpack.c.h.b16 %v1155
        %v1205 = vunpack.c.l.b16 %v1156
        %v1206 = vunpack.c.h.b16 %v1156
        %v1207 = vunpack.c.l.b16 %v1157
        %v1208 = vunpack.c.h.b16 %v1157
        %v1209 = vunpack.c.l.b16 %v1158
        %v1210 = vunpack.c.h.b16 %v1158
        %v1211 = vunpack.c.l.b16 %v1159
        %v1212 = vunpack.c.h.b16 %v1159
        %v1213 = vunpack.c.l.b16 %v1160
        %v1214 = vunpack.c.h.b16 %v1160
        %v1215 = vunpack.c.l.b16 %v1161
        %v1216 = vunpack.c.h.b16 %v1161
        %v1217 = vunpack.c.l.b16 %v1162
        %v1218 = vunpack.c.h.b16 %v1162
        %v1219 = vunpack.c.l.b16 %v1163
        %v1220 = vunpack.c.h.b16 %v1163
        %v1221 = vunpack.c.l.b16 %v1164
        %v1222 = vunpack.c.h.b16 %v1164
        %v1223 = vunpack.c.l.b16 %v1165
        %v1224 = vunpack.c.h.b16 %v1165
        %v1225 = vunpack.c.l.b16 %v1166
        %v1226 = vunpack.c.h.b16 %v1166
        %v1227 = vpack.c.b16 %v1197, %v1195
        %v1228 = vpack.c.b16 %v1198, %v1196
        %v1229 = vpack.c.b16 %v1201, %v1199
        %v1230 = vpack.c.b16 %v1202, %v1200
        %v1231 = vpack.c.b16 %v1205, %v1203
        %v1232 = vpack.c.b16 %v1206, %v1204
        %v1233 = vpack.c.b16 %v1209, %v1207
        %v1234 = vpack.c.b16 %v1210, %v1208
        %v1235 = vpack.c.b16 %v1213, %v1211
        %v1236 = vpack.c.b16 %v1214, %v1212
        %v1237 = vpack.c.b16 %v1217, %v1215
        %v1238 = vpack.c.b16 %v1218, %v1216
        %v1239 = vpack.c.b16 %v1221, %v1219
        %v1240 = vpack.c.b16 %v1222, %v1220
        %v1241 = vpack.c.b16 %v1225, %v1223
        %v1242 = vpack.c.b16 %v1226, %v1224
        %1259 = vmatprep.subr.bf16.mxu0 %v1242
        %1260 = vmatpush1.bf16.msra.mxu0 %v1241
        %1261 = vmatprep.subr.bf16.mxu0 %v1240
        %1262 = vmatpush1.bf16.msra.mxu0 %v1239
        %1263 = vmatprep.subr.bf16.mxu0 %v1238
        %1264 = vmatpush1.bf16.msra.mxu0 %v1237
        %1265 = vmatprep.subr.bf16.mxu0 %v1236
        %1266 = vmatpush1.bf16.msra.mxu0 %v1235
        %1267 = vmatprep.subr.bf16.mxu0 %v1234
        %1268 = vmatpush1.bf16.msra.mxu0 %v1233
        %1269 = vmatprep.subr.bf16.mxu0 %v1232
        %1270 = vmatpush1.bf16.msra.mxu0 %v1231
        %1271 = vmatprep.subr.bf16.mxu0 %v1230
        %1272 = vmatpush1.bf16.msra.mxu0 %v1229
        %1273 = vmatprep.subr.bf16.mxu0 %v1228
        %1274 = vmatpush1.bf16.msra.mxu0 %v1227
        %1275 = vmatprep.subr.bf16.mxu0 0
        %1276 = vmatpush2.bf16.msra.mxu0 0
        %1277 = vmatprep.subr.bf16.mxu0 0
        %1278 = vmatpush2.bf16.msra.mxu0 0
        %1279 = vmatprep.subr.bf16.mxu0 0
        %1280 = vmatpush2.bf16.msra.mxu0 0
        %1281 = vmatprep.subr.bf16.mxu0 0
        %1282 = vmatpush2.bf16.msra.mxu0 0
        %1283 = vmatprep.subr.bf16.mxu0 0
        %1284 = vmatpush2.bf16.msra.mxu0 0
        %1285 = vmatprep.subr.bf16.mxu0 0
        %1286 = vmatpush2.bf16.msra.mxu0 0
        %1287 = vmatprep.subr.bf16.mxu0 0
        %1288 = vmatpush2.bf16.msra.mxu0 0
        %1289 = vmatprep.subr.bf16.mxu0 0
        %1290 = vmatpush2.bf16.msra.mxu0 0
        %1291 = vmatprep.mubr.bf16.mxu0 0
        %1292 = vmatmul.mubr.bf16.gmra.mxu0 %v1135
        %v1293 = vpop.f32.mrf.mxu0
        %v1294 = vadd.f32 %v1172, %v1293
        %v1295 = vpop.f32.mrf.mxu0
        %v1296 = vadd.f32 %v1176, %v1295
        %v1297 = vpop.f32.mrf.mxu0
        %v1298 = vadd.f32 %v1172, %v1297
        %v1299 = vpop.f32.mrf.mxu0
        %v1300 = vadd.f32 %v1176, %v1299
        %1301 = vmatprep.mubr.bf16.mxu0 0
        %1302 = vmatmul.mubr.bf16.gmra.mxu0 %v1136
        %v1303 = vpop.f32.mrf.mxu0
        %v1304 = vadd.f32 %v1172, %v1303
        %v1305 = vpop.f32.mrf.mxu0
        %v1306 = vadd.f32 %v1176, %v1305
        %v1307 = vpop.f32.mrf.mxu0
        %v1308 = vadd.f32 %v1172, %v1307
        %v1309 = vpop.f32.mrf.mxu0
        %v1310 = vadd.f32 %v1176, %v1309
        %1311 = vmatprep.mubr.bf16.mxu0 0
        %1312 = vmatmul.mubr.bf16.gmra.mxu0 %v1137
        %v1313 = vpop.f32.mrf.mxu0
        %v1314 = vadd.f32 %v1172, %v1313
        %v1315 = vpop.f32.mrf.mxu0
        %v1316 = vadd.f32 %v1176, %v1315
        %v1317 = vpop.f32.mrf.mxu0
        %v1318 = vadd.f32 %v1172, %v1317
        %v1319 = vpop.f32.mrf.mxu0
        %v1320 = vadd.f32 %v1176, %v1319
        %1321 = vmatprep.mubr.bf16.mxu0 0
        %1322 = vmatmul.mubr.bf16.gmra.mxu0 %v1138
        %v1323 = vpop.f32.mrf.mxu0
        %v1324 = vadd.f32 %v1172, %v1323
        %v1325 = vpop.f32.mrf.mxu0
        %v1326 = vadd.f32 %v1176, %v1325
        %v1327 = vpop.f32.mrf.mxu0
        %v1328 = vadd.f32 %v1172, %v1327
        %v1329 = vpop.f32.mrf.mxu0
        %v1330 = vadd.f32 %v1176, %v1329
        %1331 = vmatprep.mubr.bf16.mxu0 0
        %1332 = vmatmul.mubr.bf16.gmra.mxu0 %v1139
        %v1333 = vpop.f32.mrf.mxu0
        %v1334 = vadd.f32 %v1172, %v1333
        %v1335 = vpop.f32.mrf.mxu0
        %v1336 = vadd.f32 %v1176, %v1335
        %v1337 = vpop.f32.mrf.mxu0
        %v1338 = vadd.f32 %v1172, %v1337
        %v1339 = vpop.f32.mrf.mxu0
        %v1340 = vadd.f32 %v1176, %v1339
        %1341 = vmatprep.mubr.bf16.mxu0 0
        %1342 = vmatmul.mubr.bf16.gmra.mxu0 %v1140
        %v1343 = vpop.f32.mrf.mxu0
        %v1344 = vadd.f32 %v1172, %v1343
        %v1345 = vpop.f32.mrf.mxu0
        %v1346 = vadd.f32 %v1176, %v1345
        %v1347 = vpop.f32.mrf.mxu0
        %v1348 = vadd.f32 %v1172, %v1347
        %v1349 = vpop.f32.mrf.mxu0
        %v1350 = vadd.f32 %v1176, %v1349
        %1351 = vmatprep.mubr.bf16.mxu0 0
        %1352 = vmatmul.mubr.bf16.gmra.mxu0 %v1141
        %v1353 = vpop.f32.mrf.mxu0
        %v1354 = vadd.f32 %v1172, %v1353
        %v1355 = vpop.f32.mrf.mxu0
        %v1356 = vadd.f32 %v1176, %v1355
        %v1357 = vpop.f32.mrf.mxu0
        %v1358 = vadd.f32 %v1172, %v1357
        %v1359 = vpop.f32.mrf.mxu0
        %v1360 = vadd.f32 %v1176, %v1359
        %1361 = vmatprep.mubr.bf16.mxu0 0
        %1362 = vmatmul.mubr.bf16.gmra.mxu0 %v1142
        %v1363 = vpop.f32.mrf.mxu0
        %v1364 = vadd.f32 %v1172, %v1363
        %v1365 = vpop.f32.mrf.mxu0
        %v1366 = vadd.f32 %v1176, %v1365
        %v1367 = vpop.f32.mrf.mxu0
        %v1368 = vadd.f32 %v1172, %v1367
        %v1369 = vpop.f32.mrf.mxu0
        %v1370 = vadd.f32 %v1176, %v1369
        %1371 = vmatprep.mubr.bf16.mxu0 0
        %1372 = vmatmul.mubr.bf16.gmra.mxu0 %v1143
        %v1373 = vpop.f32.mrf.mxu0
        %v1374 = vadd.f32 %v1172, %v1373
        %v1375 = vpop.f32.mrf.mxu0
        %v1376 = vadd.f32 %v1176, %v1375
        %v1377 = vpop.f32.mrf.mxu0
        %v1378 = vadd.f32 %v1172, %v1377
        %v1379 = vpop.f32.mrf.mxu0
        %v1380 = vadd.f32 %v1176, %v1379
        %1381 = vmatprep.mubr.bf16.mxu0 0
        %1382 = vmatmul.mubr.bf16.gmra.mxu0 %v1144
        %v1383 = vpop.f32.mrf.mxu0
        %v1384 = vadd.f32 %v1172, %v1383
        %v1385 = vpop.f32.mrf.mxu0
        %v1386 = vadd.f32 %v1176, %v1385
        %v1387 = vpop.f32.mrf.mxu0
        %v1388 = vadd.f32 %v1172, %v1387
        %v1389 = vpop.f32.mrf.mxu0
        %v1390 = vadd.f32 %v1176, %v1389
        %1391 = vmatprep.mubr.bf16.mxu0 0
        %1392 = vmatmul.mubr.bf16.gmra.mxu0 %v1145
        %v1393 = vpop.f32.mrf.mxu0
        %v1394 = vadd.f32 %v1172, %v1393
        %v1395 = vpop.f32.mrf.mxu0
        %v1396 = vadd.f32 %v1176, %v1395
        %v1397 = vpop.f32.mrf.mxu0
        %v1398 = vadd.f32 %v1172, %v1397
        %v1399 = vpop.f32.mrf.mxu0
        %v1400 = vadd.f32 %v1176, %v1399
        %1401 = vmatprep.mubr.bf16.mxu0 0
        %1402 = vmatmul.mubr.bf16.gmra.mxu0 %v1146
        %v1403 = vpop.f32.mrf.mxu0
        %v1404 = vadd.f32 %v1172, %v1403
        %v1405 = vpop.f32.mrf.mxu0
        %v1406 = vadd.f32 %v1176, %v1405
        %v1407 = vpop.f32.mrf.mxu0
        %v1408 = vadd.f32 %v1172, %v1407
        %v1409 = vpop.f32.mrf.mxu0
        %v1410 = vadd.f32 %v1176, %v1409
        %1411 = vmatprep.mubr.bf16.mxu0 0
        %1412 = vmatmul.mubr.bf16.gmra.mxu0 %v1147
        %v1413 = vpop.f32.mrf.mxu0
        %v1414 = vadd.f32 %v1172, %v1413
        %v1415 = vpop.f32.mrf.mxu0
        %v1416 = vadd.f32 %v1176, %v1415
        %v1417 = vpop.f32.mrf.mxu0
        %v1418 = vadd.f32 %v1172, %v1417
        %v1419 = vpop.f32.mrf.mxu0
        %v1420 = vadd.f32 %v1176, %v1419
        %1421 = vmatprep.mubr.bf16.mxu0 0
        %1422 = vmatmul.mubr.bf16.gmra.mxu0 %v1148
        %v1423 = vpop.f32.mrf.mxu0
        %v1424 = vadd.f32 %v1172, %v1423
        %v1425 = vpop.f32.mrf.mxu0
        %v1426 = vadd.f32 %v1176, %v1425
        %v1427 = vpop.f32.mrf.mxu0
        %v1428 = vadd.f32 %v1172, %v1427
        %v1429 = vpop.f32.mrf.mxu0
        %v1430 = vadd.f32 %v1176, %v1429
        %1431 = vmatprep.mubr.bf16.mxu0 0
        %1432 = vmatmul.mubr.bf16.gmra.mxu0 %v1149
        %v1433 = vpop.f32.mrf.mxu0
        %v1434 = vadd.f32 %v1172, %v1433
        %v1435 = vpop.f32.mrf.mxu0
        %v1436 = vadd.f32 %v1176, %v1435
        %v1437 = vpop.f32.mrf.mxu0
        %v1438 = vadd.f32 %v1172, %v1437
        %v1439 = vpop.f32.mrf.mxu0
        %v1440 = vadd.f32 %v1176, %v1439
        %1441 = vmatprep.mubr.bf16.mxu0 0
        %1442 = vmatmul.mubr.bf16.gmra.mxu0 %v1150
        %v1443 = vpop.f32.mrf.mxu0
        %v1444 = vadd.f32 %v1172, %v1443
        %v1445 = vpop.f32.mrf.mxu0
        %v1446 = vadd.f32 %v1176, %v1445
        %v1447 = vpop.f32.mrf.mxu0
        %v1448 = vadd.f32 %v1172, %v1447
        %v1449 = vpop.f32.mrf.mxu0
        %v1450 = vadd.f32 %v1176, %v1449
        %1451 = vdwg.mxu0
        %v1452 = vmul.f32 %v1294, %v1294
        %v1453 = vmul.f32 %v1298, %v1298
        %v1454 = vmul.f32 %v1304, %v1304
        %v1455 = vmul.f32 %v1308, %v1308
        %v1456 = vmul.f32 %v1314, %v1314
        %v1457 = vmul.f32 %v1318, %v1318
        %v1458 = vmul.f32 %v1324, %v1324
        %v1459 = vmul.f32 %v1328, %v1328
        %v1460 = vmul.f32 %v1334, %v1334
        %v1461 = vmul.f32 %v1338, %v1338
        %v1462 = vmul.f32 %v1344, %v1344
        %v1463 = vmul.f32 %v1348, %v1348
        %v1464 = vmul.f32 %v1354, %v1354
        %v1465 = vmul.f32 %v1358, %v1358
        %v1466 = vmul.f32 %v1364, %v1364
        %v1467 = vmul.f32 %v1368, %v1368
        %v1468 = vmul.f32 %v1374, %v1374
        %v1469 = vmul.f32 %v1378, %v1378
        %v1470 = vmul.f32 %v1384, %v1384
        %v1471 = vmul.f32 %v1388, %v1388
        %v1472 = vmul.f32 %v1394, %v1394
        %v1473 = vmul.f32 %v1398, %v1398
        %v1474 = vmul.f32 %v1404, %v1404
        %v1475 = vmul.f32 %v1408, %v1408
        %v1476 = vmul.f32 %v1414, %v1414
        %v1477 = vmul.f32 %v1418, %v1418
        %v1478 = vmul.f32 %v1424, %v1424
        %v1479 = vmul.f32 %v1428, %v1428
        %v1480 = vmul.f32 %v1434, %v1434
        %v1481 = vmul.f32 %v1438, %v1438
        %v1482 = vmul.f32 %v1444, %v1444
        %v1483 = vmul.f32 %v1448, %v1448
        %1484 = vadd.xlane.f32.xlu0 %v1452
        %v1485 = vpop.xlane.xlu0 %1484
        %1486 = vadd.xlane.f32.xlu0 %v1453
        %v1487 = vpop.xlane.xlu0 %1486
        %1488 = vadd.xlane.f32.xlu0 %v1454
        %v1489 = vpop.xlane.xlu0 %1488
        %1490 = vadd.xlane.f32.xlu0 %v1455
        %v1491 = vpop.xlane.xlu0 %1490
        %1492 = vadd.xlane.f32.xlu0 %v1456
        %v1493 = vpop.xlane.xlu0 %1492
        %1494 = vadd.xlane.f32.xlu0 %v1457
        %v1495 = vpop.xlane.xlu0 %1494
        %1496 = vadd.xlane.f32.xlu0 %v1458
        %v1497 = vpop.xlane.xlu0 %1496
        %1498 = vadd.xlane.f32.xlu0 %v1459
        %v1499 = vpop.xlane.xlu0 %1498
        %1500 = vadd.xlane.f32.xlu0 %v1460
        %v1501 = vpop.xlane.xlu0 %1500
        %1502 = vadd.xlane.f32.xlu0 %v1461
        %v1503 = vpop.xlane.xlu0 %1502
        %1504 = vadd.xlane.f32.xlu0 %v1462
        %v1505 = vpop.xlane.xlu0 %1504
        %1506 = vadd.xlane.f32.xlu0 %v1463
        %v1507 = vpop.xlane.xlu0 %1506
        %1508 = vadd.xlane.f32.xlu0 %v1464
        %v1509 = vpop.xlane.xlu0 %1508
        %1510 = vadd.xlane.f32.xlu0 %v1465
        %v1511 = vpop.xlane.xlu0 %1510
        %1512 = vadd.xlane.f32.xlu0 %v1466
        %v1513 = vpop.xlane.xlu0 %1512
        %1514 = vadd.xlane.f32.xlu0 %v1467
        %v1515 = vpop.xlane.xlu0 %1514
        %1516 = vadd.xlane.f32.xlu0 %v1468
        %v1517 = vpop.xlane.xlu0 %1516
        %1518 = vadd.xlane.f32.xlu0 %v1469
        %v1519 = vpop.xlane.xlu0 %1518
        %1520 = vadd.xlane.f32.xlu0 %v1470
        %v1521 = vpop.xlane.xlu0 %1520
        %1522 = vadd.xlane.f32.xlu0 %v1471
        %v1523 = vpop.xlane.xlu0 %1522
        %1524 = vadd.xlane.f32.xlu0 %v1472
        %v1525 = vpop.xlane.xlu0 %1524
        %1526 = vadd.xlane.f32.xlu0 %v1473
        %v1527 = vpop.xlane.xlu0 %1526
        %1528 = vadd.xlane.f32.xlu0 %v1474
        %v1529 = vpop.xlane.xlu0 %1528
        %1530 = vadd.xlane.f32.xlu0 %v1475
        %v1531 = vpop.xlane.xlu0 %1530
        %1532 = vadd.xlane.f32.xlu0 %v1476
        %v1533 = vpop.xlane.xlu0 %1532
        %1534 = vadd.xlane.f32.xlu0 %v1477
        %v1535 = vpop.xlane.xlu0 %1534
        %1536 = vadd.xlane.f32.xlu0 %v1478
        %v1537 = vpop.xlane.xlu0 %1536
        %1538 = vadd.xlane.f32.xlu0 %v1479
        %v1539 = vpop.xlane.xlu0 %1538
        %1540 = vadd.xlane.f32.xlu0 %v1480
        %v1541 = vpop.xlane.xlu0 %1540
        %1542 = vadd.xlane.f32.xlu0 %v1481
        %v1543 = vpop.xlane.xlu0 %1542
        %1544 = vadd.xlane.f32.xlu0 %v1482
        %v1545 = vpop.xlane.xlu0 %1544
        %1546 = vadd.xlane.f32.xlu0 %v1483
        %v1547 = vpop.xlane.xlu0 %1546
        %v1548 = vadd.f32 %v1485, 1e-07
        %v1549 = vadd.f32 %v1487, 1e-07
        %v1550 = vadd.f32 %v1489, 1e-07
        %v1551 = vadd.f32 %v1491, 1e-07
        %v1552 = vadd.f32 %v1493, 1e-07
        %v1553 = vadd.f32 %v1495, 1e-07
        %v1554 = vadd.f32 %v1497, 1e-07
        %v1555 = vadd.f32 %v1499, 1e-07
        %v1556 = vadd.f32 %v1501, 1e-07
        %v1557 = vadd.f32 %v1503, 1e-07
        %v1558 = vadd.f32 %v1505, 1e-07
        %v1559 = vadd.f32 %v1507, 1e-07
        %v1560 = vadd.f32 %v1509, 1e-07
        %v1561 = vadd.f32 %v1511, 1e-07
        %v1562 = vadd.f32 %v1513, 1e-07
        %v1563 = vadd.f32 %v1515, 1e-07
        %v1564 = vadd.f32 %v1517, 1e-07
        %v1565 = vadd.f32 %v1519, 1e-07
        %v1566 = vadd.f32 %v1521, 1e-07
        %v1567 = vadd.f32 %v1523, 1e-07
        %v1568 = vadd.f32 %v1525, 1e-07
        %v1569 = vadd.f32 %v1527, 1e-07
        %v1570 = vadd.f32 %v1529, 1e-07
        %v1571 = vadd.f32 %v1531, 1e-07
        %v1572 = vadd.f32 %v1533, 1e-07
        %v1573 = vadd.f32 %v1535, 1e-07
        %v1574 = vadd.f32 %v1537, 1e-07
        %v1575 = vadd.f32 %v1539, 1e-07
        %v1576 = vadd.f32 %v1541, 1e-07
        %v1577 = vadd.f32 %v1543, 1e-07
        %v1578 = vadd.f32 %v1545, 1e-07
        %v1579 = vadd.f32 %v1547, 1e-07
        %v1580 = vrcp.pop %v1548
        %v1581 = vrcp.pop %v1549
        %v1582 = vrcp.pop %v1550
        %v1583 = vrcp.pop %v1551
        %v1584 = vrcp.pop %v1552
        %v1585 = vrcp.pop %v1553
        %v1586 = vrcp.pop %v1554
        %v1587 = vrcp.pop %v1555
        %v1588 = vrcp.pop %v1556
        %v1589 = vrcp.pop %v1557
        %v1590 = vrcp.pop %v1558
        %v1591 = vrcp.pop %v1559
        %v1592 = vrcp.pop %v1560
        %v1593 = vrcp.pop %v1561
        %v1594 = vrcp.pop %v1562
        %v1595 = vrcp.pop %v1563
        %v1596 = vrcp.pop %v1564
        %v1597 = vrcp.pop %v1565
        %v1598 = vrcp.pop %v1566
        %v1599 = vrcp.pop %v1567
        %v1600 = vrcp.pop %v1568
        %v1601 = vrcp.pop %v1569
        %v1602 = vrcp.pop %v1570
        %v1603 = vrcp.pop %v1571
        %v1604 = vrcp.pop %v1572
        %v1605 = vrcp.pop %v1573
        %v1606 = vrcp.pop %v1574
        %v1607 = vrcp.pop %v1575
        %v1608 = vrcp.pop %v1576
        %v1609 = vrcp.pop %v1577
        %v1610 = vrcp.pop %v1578
        %v1611 = vrcp.pop %v1579
        %v1612 = vmul.f32 %v1452, %v1580
        %v1613 = vmul.f32 %v1453, %v1581
        %v1614 = vmul.f32 %v1454, %v1582
        %v1615 = vmul.f32 %v1455, %v1583
        %v1616 = vmul.f32 %v1456, %v1584
        %v1617 = vmul.f32 %v1457, %v1585
        %v1618 = vmul.f32 %v1458, %v1586
        %v1619 = vmul.f32 %v1459, %v1587
        %v1620 = vmul.f32 %v1460, %v1588
        %v1621 = vmul.f32 %v1461, %v1589
        %v1622 = vmul.f32 %v1462, %v1590
        %v1623 = vmul.f32 %v1463, %v1591
        %v1624 = vmul.f32 %v1464, %v1592
        %v1625 = vmul.f32 %v1465, %v1593
        %v1626 = vmul.f32 %v1466, %v1594
        %v1627 = vmul.f32 %v1467, %v1595
        %v1628 = vmul.f32 %v1468, %v1596
        %v1629 = vmul.f32 %v1469, %v1597
        %v1630 = vmul.f32 %v1470, %v1598
        %v1631 = vmul.f32 %v1471, %v1599
        %v1632 = vmul.f32 %v1472, %v1600
        %v1633 = vmul.f32 %v1473, %v1601
        %v1634 = vmul.f32 %v1474, %v1602
        %v1635 = vmul.f32 %v1475, %v1603
        %v1636 = vmul.f32 %v1476, %v1604
        %v1637 = vmul.f32 %v1477, %v1605
        %v1638 = vmul.f32 %v1478, %v1606
        %v1639 = vmul.f32 %v1479, %v1607
        %v1640 = vmul.f32 %v1480, %v1608
        %v1641 = vmul.f32 %v1481, %v1609
        %v1642 = vmul.f32 %v1482, %v1610
        %v1643 = vmul.f32 %v1483, %v1611
        %v1644 = vld [vmem:[%s250] sm:$0xff]
        %v1645 = vld [vmem:[%s250 + $0x8] sm:$0xff]
        %v1646 = vld [vmem:[%s250 + $0x10] sm:$0xff]
        %v1647 = vld [vmem:[%s250 + $0x18] sm:$0xff]
        %v1648 = vld [vmem:[%s250 + $0x20] sm:$0xff]
        %v1649 = vld [vmem:[%s250 + $0x28] sm:$0xff]
        %v1650 = vld [vmem:[%s250 + $0x30] sm:$0xff]
        %v1651 = vld [vmem:[%s250 + $0x38] sm:$0xff]
        %v1652 = vld [vmem:[%s250 + $0x40] sm:$0xff]
        %v1653 = vld [vmem:[%s250 + $0x48] sm:$0xff]
        %v1654 = vld [vmem:[%s250 + $0x50] sm:$0xff]
        %v1655 = vld [vmem:[%s250 + $0x58] sm:$0xff]
        %v1656 = vld [vmem:[%s250 + $0x60] sm:$0xff]
        %v1657 = vld [vmem:[%s250 + $0x68] sm:$0xff]
        %v1658 = vld [vmem:[%s250 + $0x70] sm:$0xff]
        %v1659 = vld [vmem:[%s250 + $0x78] sm:$0xff]
        %v1660 = vpack.c.bf16 %v1613, %v1612
        %v1661 = vpack.c.bf16 %v1615, %v1614
        %v1662 = vpack.c.bf16 %v1617, %v1616
        %v1663 = vpack.c.bf16 %v1619, %v1618
        %v1664 = vpack.c.bf16 %v1621, %v1620
        %v1665 = vpack.c.bf16 %v1623, %v1622
        %v1666 = vpack.c.bf16 %v1625, %v1624
        %v1667 = vpack.c.bf16 %v1627, %v1626
        %v1668 = vpack.c.bf16 %v1629, %v1628
        %v1669 = vpack.c.bf16 %v1631, %v1630
        %v1670 = vpack.c.bf16 %v1633, %v1632
        %v1671 = vpack.c.bf16 %v1635, %v1634
        %v1672 = vpack.c.bf16 %v1637, %v1636
        %v1673 = vpack.c.bf16 %v1639, %v1638
        %v1674 = vpack.c.bf16 %v1641, %v1640
        %v1675 = vpack.c.bf16 %v1643, %v1642
        %v1676 = vpack.c.bf16 %v1300, %v1296
        %v1677 = vpack.c.bf16 %v1310, %v1306
        %v1678 = vpack.c.bf16 %v1320, %v1316
        %v1679 = vpack.c.bf16 %v1330, %v1326
        %v1680 = vpack.c.bf16 %v1340, %v1336
        %v1681 = vpack.c.bf16 %v1350, %v1346
        %v1682 = vpack.c.bf16 %v1360, %v1356
        %v1683 = vpack.c.bf16 %v1370, %v1366
        %v1684 = vpack.c.bf16 %v1380, %v1376
        %v1685 = vpack.c.bf16 %v1390, %v1386
        %v1686 = vpack.c.bf16 %v1400, %v1396
        %v1687 = vpack.c.bf16 %v1410, %v1406
        %v1688 = vpack.c.bf16 %v1420, %v1416
        %v1689 = vpack.c.bf16 %v1430, %v1426
        %v1690 = vpack.c.bf16 %v1440, %v1436
        %v1691 = vpack.c.bf16 %v1450, %v1446
        %1692 = vxpose.xlu0.c.b16.start [1/8] %v1660, 128
        %1693 = vxpose.xlu0.c.b16.cont [2/8] %v1661, 128
        %1694 = vxpose.xlu0.c.b16.cont [3/8] %v1662, 128
        %1695 = vxpose.xlu0.c.b16.cont [4/8] %v1663, 128
        %1696 = vxpose.xlu0.c.b16.cont [5/8] %v1664, 128
        %1697 = vxpose.xlu0.c.b16.cont [6/8] %v1665, 128
        %1698 = vxpose.xlu0.c.b16.cont [7/8] %v1666, 128
        %1699 = vxpose.xlu0.c.b16.end [8/8] %v1667, 128
        %v1700 = vpop.trf.xlu0
        %v1701 = vpop.trf.xlu0
        %v1702 = vpop.trf.xlu0
        %v1703 = vpop.trf.xlu0
        %v1704 = vpop.trf.xlu0
        %v1705 = vpop.trf.xlu0
        %v1706 = vpop.trf.xlu0
        %v1707 = vpop.trf.xlu0
        %1708 = vxpose.xlu0.c.b16.start [1/8] %v1668, 128
        %1709 = vxpose.xlu0.c.b16.cont [2/8] %v1669, 128
        %1710 = vxpose.xlu0.c.b16.cont [3/8] %v1670, 128
        %1711 = vxpose.xlu0.c.b16.cont [4/8] %v1671, 128
        %1712 = vxpose.xlu0.c.b16.cont [5/8] %v1672, 128
        %1713 = vxpose.xlu0.c.b16.cont [6/8] %v1673, 128
        %1714 = vxpose.xlu0.c.b16.cont [7/8] %v1674, 128
        %1715 = vxpose.xlu0.c.b16.end [8/8] %v1675, 128
        %v1716 = vpop.trf.xlu0
        %v1717 = vpop.trf.xlu0
        %v1718 = vpop.trf.xlu0
        %v1719 = vpop.trf.xlu0
        %v1720 = vpop.trf.xlu0
        %v1721 = vpop.trf.xlu0
        %v1722 = vpop.trf.xlu0
        %v1723 = vpop.trf.xlu0
        %1724 = vmatprep.subr.bf16.mxu0 0
        %1725 = vmatpush1.bf16.msra.mxu0 %v1683
        %1726 = vmatprep.subr.bf16.mxu0 0
        %1727 = vmatpush1.bf16.msra.mxu0 %v1682
        %1728 = vmatprep.subr.bf16.mxu0 0
        %1729 = vmatpush1.bf16.msra.mxu0 %v1681
        %1730 = vmatprep.subr.bf16.mxu0 0
        %1731 = vmatpush1.bf16.msra.mxu0 %v1680
        %1732 = vmatprep.subr.bf16.mxu0 0
        %1733 = vmatpush1.bf16.msra.mxu0 %v1679
        %1734 = vmatprep.subr.bf16.mxu0 0
        %1735 = vmatpush1.bf16.msra.mxu0 %v1678
        %1736 = vmatprep.subr.bf16.mxu0 0
        %1737 = vmatpush1.bf16.msra.mxu0 %v1677
        %1738 = vmatprep.subr.bf16.mxu0 0
        %1739 = vmatpush1.bf16.msra.mxu0 %v1676
        %1740 = vmatprep.subr.bf16.mxu0 0
        %1741 = vmatpush2.bf16.msra.mxu0 %v1691
        %1742 = vmatprep.subr.bf16.mxu0 0
        %1743 = vmatpush2.bf16.msra.mxu0 %v1690
        %1744 = vmatprep.subr.bf16.mxu0 0
        %1745 = vmatpush2.bf16.msra.mxu0 %v1689
        %1746 = vmatprep.subr.bf16.mxu0 0
        %1747 = vmatpush2.bf16.msra.mxu0 %v1688
        %1748 = vmatprep.subr.bf16.mxu0 0
        %1749 = vmatpush2.bf16.msra.mxu0 %v1687
        %1750 = vmatprep.subr.bf16.mxu0 0
        %1751 = vmatpush2.bf16.msra.mxu0 %v1686
        %1752 = vmatprep.subr.bf16.mxu0 0
        %1753 = vmatpush2.bf16.msra.mxu0 %v1685
        %1754 = vmatprep.subr.bf16.mxu0 0
        %1755 = vmatpush2.bf16.msra.mxu0 %v1684
        %1756 = vmatprep.mubr.bf16.mxu0 %v1716
        %1757 = vmatmul.mubr.bf16.gmra.mxu0 %v1700
        %v1758 = vpop.f32.mrf.mxu0
        %v1759 = vadd.f32 0.0, %v1758
        %v1760 = vpop.f32.mrf.mxu0
        %v1761 = vpop.f32.mrf.mxu0
        %v1762 = vadd.f32 0.0, %v1761
        %v1763 = vpop.f32.mrf.mxu0
        %1764 = vmatprep.mubr.bf16.mxu0 %v1717
        %1765 = vmatmul.mubr.bf16.gmra.mxu0 %v1701
        %v1766 = vpop.f32.mrf.mxu0
        %v1767 = vadd.f32 0.0, %v1766
        %v1768 = vpop.f32.mrf.mxu0
        %v1769 = vpop.f32.mrf.mxu0
        %v1770 = vadd.f32 0.0, %v1769
        %v1771 = vpop.f32.mrf.mxu0
        %1772 = vmatprep.mubr.bf16.mxu0 %v1718
        %1773 = vmatmul.mubr.bf16.gmra.mxu0 %v1702
        %v1774 = vpop.f32.mrf.mxu0
        %v1775 = vadd.f32 0.0, %v1774
        %v1776 = vpop.f32.mrf.mxu0
        %v1777 = vpop.f32.mrf.mxu0
        %v1778 = vadd.f32 0.0, %v1777
        %v1779 = vpop.f32.mrf.mxu0
        %1780 = vmatprep.mubr.bf16.mxu0 %v1719
        %1781 = vmatmul.mubr.bf16.gmra.mxu0 %v1703
        %v1782 = vpop.f32.mrf.mxu0
        %v1783 = vadd.f32 0.0, %v1782
        %v1784 = vpop.f32.mrf.mxu0
        %v1785 = vpop.f32.mrf.mxu0
        %v1786 = vadd.f32 0.0, %v1785
        %v1787 = vpop.f32.mrf.mxu0
        %1788 = vmatprep.mubr.bf16.mxu0 %v1720
        %1789 = vmatmul.mubr.bf16.gmra.mxu0 %v1704
        %v1790 = vpop.f32.mrf.mxu0
        %v1791 = vadd.f32 0.0, %v1790
        %v1792 = vpop.f32.mrf.mxu0
        %v1793 = vpop.f32.mrf.mxu0
        %v1794 = vadd.f32 0.0, %v1793
        %v1795 = vpop.f32.mrf.mxu0
        %1796 = vmatprep.mubr.bf16.mxu0 %v1721
        %1797 = vmatmul.mubr.bf16.gmra.mxu0 %v1705
        %v1798 = vpop.f32.mrf.mxu0
        %v1799 = vadd.f32 0.0, %v1798
        %v1800 = vpop.f32.mrf.mxu0
        %v1801 = vpop.f32.mrf.mxu0
        %v1802 = vadd.f32 0.0, %v1801
        %v1803 = vpop.f32.mrf.mxu0
        %1804 = vmatprep.mubr.bf16.mxu0 %v1722
        %1805 = vmatmul.mubr.bf16.gmra.mxu0 %v1706
        %v1806 = vpop.f32.mrf.mxu0
        %v1807 = vadd.f32 0.0, %v1806
        %v1808 = vpop.f32.mrf.mxu0
        %v1809 = vpop.f32.mrf.mxu0
        %v1810 = vadd.f32 0.0, %v1809
        %v1811 = vpop.f32.mrf.mxu0
        %1812 = vmatprep.mubr.bf16.mxu0 %v1723
        %1813 = vmatmul.mubr.bf16.gmra.mxu0 %v1707
        %v1814 = vpop.f32.mrf.mxu0
        %v1815 = vadd.f32 0.0, %v1814
        %v1816 = vpop.f32.mrf.mxu0
        %v1817 = vpop.f32.mrf.mxu0
        %v1818 = vadd.f32 0.0, %v1817
        %v1819 = vpop.f32.mrf.mxu0
        %1820 = vdwg.mxu0
        %v1821 = vadd.f32 %v1644, %v1759
        %v1822 = vadd.f32 %v1645, %v1762
        %v1823 = vadd.f32 %v1646, %v1767
        %v1824 = vadd.f32 %v1647, %v1770
        %v1825 = vadd.f32 %v1648, %v1775
        %v1826 = vadd.f32 %v1649, %v1778
        %v1827 = vadd.f32 %v1650, %v1783
        %v1828 = vadd.f32 %v1651, %v1786
        %v1829 = vadd.f32 %v1652, %v1791
        %v1830 = vadd.f32 %v1653, %v1794
        %v1831 = vadd.f32 %v1654, %v1799
        %v1832 = vadd.f32 %v1655, %v1802
        %v1833 = vadd.f32 %v1656, %v1807
        %v1834 = vadd.f32 %v1657, %v1810
        %v1835 = vadd.f32 %v1658, %v1815
        %v1836 = vadd.f32 %v1659, %v1818
        %1837 = vst [vmem:[%s250] sm:$0xff] %v1821
        %1838 = vst [vmem:[%s250 + $0x8] sm:$0xff] %v1822
        %1839 = vst [vmem:[%s250 + $0x10] sm:$0xff] %v1823
        %1840 = vst [vmem:[%s250 + $0x18] sm:$0xff] %v1824
        %1841 = vst [vmem:[%s250 + $0x20] sm:$0xff] %v1825
        %1842 = vst [vmem:[%s250 + $0x28] sm:$0xff] %v1826
        %1843 = vst [vmem:[%s250 + $0x30] sm:$0xff] %v1827
        %1844 = vst [vmem:[%s250 + $0x38] sm:$0xff] %v1828
        %1845 = vst [vmem:[%s250 + $0x40] sm:$0xff] %v1829
        %1846 = vst [vmem:[%s250 + $0x48] sm:$0xff] %v1830
        %1847 = vst [vmem:[%s250 + $0x50] sm:$0xff] %v1831
        %1848 = vst [vmem:[%s250 + $0x58] sm:$0xff] %v1832
        %1849 = vst [vmem:[%s250 + $0x60] sm:$0xff] %v1833
        %1850 = vst [vmem:[%s250 + $0x68] sm:$0xff] %v1834
        %1851 = vst [vmem:[%s250 + $0x70] sm:$0xff] %v1835
        %1852 = vst [vmem:[%s250 + $0x78] sm:$0xff] %v1836
        %v1853 = vld [vmem:[%s256] sm:$0x1]
        %v1854 = vmul.f32 %v1612, %v1612
        %v1855 = vmul.f32 %v1613, %v1613
        %v1856 = vmul.f32 %v1614, %v1614
        %v1857 = vmul.f32 %v1615, %v1615
        %v1858 = vmul.f32 %v1616, %v1616
        %v1859 = vmul.f32 %v1617, %v1617
        %v1860 = vmul.f32 %v1618, %v1618
        %v1861 = vmul.f32 %v1619, %v1619
        %v1862 = vmul.f32 %v1620, %v1620
        %v1863 = vmul.f32 %v1621, %v1621
        %v1864 = vmul.f32 %v1622, %v1622
        %v1865 = vmul.f32 %v1623, %v1623
        %v1866 = vmul.f32 %v1624, %v1624
        %v1867 = vmul.f32 %v1625, %v1625
        %v1868 = vmul.f32 %v1626, %v1626
        %v1869 = vmul.f32 %v1627, %v1627
        %v1870 = vmul.f32 %v1628, %v1628
        %v1871 = vmul.f32 %v1629, %v1629
        %v1872 = vmul.f32 %v1630, %v1630
        %v1873 = vmul.f32 %v1631, %v1631
        %v1874 = vmul.f32 %v1632, %v1632
        %v1875 = vmul.f32 %v1633, %v1633
        %v1876 = vmul.f32 %v1634, %v1634
        %v1877 = vmul.f32 %v1635, %v1635
        %v1878 = vmul.f32 %v1636, %v1636
        %v1879 = vmul.f32 %v1637, %v1637
        %v1880 = vmul.f32 %v1638, %v1638
        %v1881 = vmul.f32 %v1639, %v1639
        %v1882 = vmul.f32 %v1640, %v1640
        %v1883 = vmul.f32 %v1641, %v1641
        %v1884 = vmul.f32 %v1642, %v1642
        %v1885 = vmul.f32 %v1643, %v1643
        %v1886 = vadd.f32 %v1854, %v1855
        %v1887 = vadd.f32 %v1886, %v1856
        %v1888 = vadd.f32 %v1887, %v1857
        %v1889 = vadd.f32 %v1888, %v1858
        %v1890 = vadd.f32 %v1889, %v1859
        %v1891 = vadd.f32 %v1890, %v1860
        %v1892 = vadd.f32 %v1891, %v1861
        %v1893 = vadd.f32 %v1892, %v1862
        %v1894 = vadd.f32 %v1893, %v1863
        %v1895 = vadd.f32 %v1894, %v1864
        %v1896 = vadd.f32 %v1895, %v1865
        %v1897 = vadd.f32 %v1896, %v1866
        %v1898 = vadd.f32 %v1897, %v1867
        %v1899 = vadd.f32 %v1898, %v1868
        %v1900 = vadd.f32 %v1899, %v1869
        %v1901 = vadd.f32 %v1900, %v1870
        %v1902 = vadd.f32 %v1901, %v1871
        %v1903 = vadd.f32 %v1902, %v1872
        %v1904 = vadd.f32 %v1903, %v1873
        %v1905 = vadd.f32 %v1904, %v1874
        %v1906 = vadd.f32 %v1905, %v1875
        %v1907 = vadd.f32 %v1906, %v1876
        %v1908 = vadd.f32 %v1907, %v1877
        %v1909 = vadd.f32 %v1908, %v1878
        %v1910 = vadd.f32 %v1909, %v1879
        %v1911 = vadd.f32 %v1910, %v1880
        %v1912 = vadd.f32 %v1911, %v1881
        %v1913 = vadd.f32 %v1912, %v1882
        %v1914 = vadd.f32 %v1913, %v1883
        %v1915 = vadd.f32 %v1914, %v1884
        %v1916 = vadd.f32 %v1915, %v1885
        %v1917 = vrot.slane %v1916, 4
        %v1918 = vadd.f32 %v1916, %v1917
        %v1919 = vrot.slane %v1918, 2
        %v1920 = vadd.f32 %v1918, %v1919
        %v1921 = vrot.slane %v1920, 1
        %v1922 = vadd.f32 %v1920, %v1921
        %v1923 = vadd.f32 %v1853, %v1922
        %1924 = vst [vmem:[%s256] sm:$0x1] %v1923
        %s1925 = sand.u32 %s116, 1
        %s1926 = scalar_lea.sflag [#allocation4], %s1925
        %s1927 = sand.u32 %s116, 1
        %s1928 = smul.addr %s1927, 128
        %s1929 = scalar_lea.vmem [#allocation7], %s1928
        %s1930 = sand.u32 %s142, 1
        %s1931 = scalar_lea.sflag [#allocation9], %s1930
        %s1932 = sand.u32 %s142, 1
        %s1933 = scalar_lea.vmem [#allocation8], %s1932
        // Predicated region
        $region45: #{tpu_custom_call.1} parent=31 // pred_check
          %p1934 = pneg %p126
        $region46: #{tpu_custom_call.1} parent=31 // pred_check_branch
          %1936 = sbr.rel (%p1934) target = $region48
        $region47: #{tpu_custom_call.1} parent=31 // pred_region
          %s1938 = ssub.s32 2048, 2048
          %1939 = vsyncadd %s1926, %s1938
          %s1940 = smul.addr %s30, 16
          %s1941 = smul.addr %s1940, 128
          %s1942 = scalar_lea.hbm %s3, %s1941
          %s1943 = sshll.u32 %s1929, 4
          %s1944 = int_to_ptr.vmem [resolvable:$true] %s1943
          %1949 = dma.vmem_to_hbm [thread:$0]  %s1944, 2048, %s1942, %s1926, 128, 128, 8
        $region48: #{tpu_custom_call.1} parent=31 // pred_fallthru
          _
        // Predicated region
        $region49: #{tpu_custom_call.1} parent=31 // pred_check
          %p1950 = pneg %p152
        $region50: #{tpu_custom_call.1} parent=31 // pred_check_branch
          %1952 = sbr.rel (%p1950) target = $region52
        $region51: #{tpu_custom_call.1} parent=31 // pred_region
          %s1954 = ssub.s32 16, 16
          %1955 = vsyncadd %s1931, %s1954
          %s1956 = smul.addr %s30, 16
          %s1957 = scalar_lea.hbm %s4, %s1956
          %s1959 = sshll.u32 %s1933, 4
          %s1960 = int_to_ptr.vmem [resolvable:$true] %s1959
          %1962 = dma.vmem_to_hbm [thread:$0]  %s1960, 16, %s1957, %s1931
        $region52: #{tpu_custom_call.1} parent=31 // pred_fallthru
          _
      $region32: #{tpu_custom_call.1} parent=5 // pred_fallthru
        _
      %p1963 = scmp.le.s32.totalorder 2, %s21
      // Predicated region
      $region53: #{tpu_custom_call.1} parent=5 // pred_check
        %p1964 = pneg %p1963
      $region54: #{tpu_custom_call.1} parent=5 // pred_check_branch
        %1966 = sbr.rel (%p1964) target = $region56
      $region55: #{tpu_custom_call.1} parent=5 // pred_region
        %s1967 = ssub.s32 %s21, 2
        // Predicated region
        $region57: #{tpu_custom_call.1} parent=55 // pred_check
          %p1968 = pneg %p132
        $region58: #{tpu_custom_call.1} parent=55 // pred_check_branch
          %1970 = sbr.rel (%p1968) target = $region60
        $region59: #{tpu_custom_call.1} parent=55 // pred_region
          %s1971 = sand.u32 %s117, 1
          %s1972 = scalar_lea.sflag [#allocation4], %s1971
          %s1973 = sand.u32 %s117, 1
          %s1974 = smul.addr %s1973, 128
          %s1975 = scalar_lea.vmem [#allocation7], %s1974
          %1976 = dma.done %s1972, 2048
        $region60: #{tpu_custom_call.1} parent=55 // pred_fallthru
          _
        // Predicated region
        $region61: #{tpu_custom_call.1} parent=55 // pred_check
          %p1977 = pneg %p158
        $region62: #{tpu_custom_call.1} parent=55 // pred_check_branch
          %1979 = sbr.rel (%p1977) target = $region64
        $region63: #{tpu_custom_call.1} parent=55 // pred_region
          %s1980 = sand.u32 %s143, 1
          %s1981 = scalar_lea.sflag [#allocation9], %s1980
          %s1982 = sand.u32 %s143, 1
          %s1983 = scalar_lea.vmem [#allocation8], %s1982
          %1984 = dma.done %s1981, 16
        $region64: #{tpu_custom_call.1} parent=55 // pred_fallthru
          _
      $region56: #{tpu_custom_call.1} parent=5 // pred_fallthru
        _
    $region6: #{tpu_custom_call.1} parent=1 // loop_footer
      %s25 = sadd.s32 1, %s21
    $region7: #{tpu_custom_call.1} parent=1 // loop_footer_branch
      %20 = sbr.rel target = $region3
    $region8: #{tpu_custom_call.1} parent=1 // loop_exit
      _
    %1985 = vsyncpa [#allocation3], 1
    %s1986 = scalar_lea.sflag [#allocation3], 1
    %1987 = vsyncpa %s1986, 1
    %1988 = vsyncpa [#allocation6], 1
    %1989 = vsyncpa [#allocation4], 1
    %s1990 = scalar_lea.sflag [#allocation4], 1
    %1991 = vsyncpa %s1990, 1
    %1992 = vsyncpa [#allocation9], 1
    %s1993 = scalar_lea.sflag [#allocation9], 1
    %1994 = vsyncpa %s1993, 1

</llo_original>
